<compile_context>
chip_gen: v7x
topology: tpu7x:2x2x1
jax: 0.10.0
libtpu: 0.0.40
codegen_flags: <defaults>
</compile_context>

<pallas_src>
import functools

import jax
import jax.numpy as jnp
from jax.experimental import pallas as pl
from jax.experimental.pallas import tpu as pltpu


# ----------------------------------------------------------------------------
# Pallas kernels
# ----------------------------------------------------------------------------
def _matmul_relu_kernel(x_ref, w_ref, b_ref, o_ref):
    """o = relu(x @ w + b); x/w may be bf16, accumulation is f32."""
    y = jnp.dot(x_ref[...], w_ref[...], preferred_element_type=jnp.float32)
    o_ref[...] = jnp.maximum(y + b_ref[...], 0.0)


def pallas_conv_matmul(patches, w_mat, b_row, tm=128):
    """Row-tiled matmul+bias+relu used for the im2col'd convolutions."""
    M, K = patches.shape
    K2, N = w_mat.shape
    assert K == K2, (K, K2)
    if M % tm != 0:
        tm = M
    grid = (M // tm,)
    return pl.pallas_call(
        _matmul_relu_kernel,
        out_shape=jax.ShapeDtypeStruct((M, N), jnp.float32),
        grid=grid,
        in_specs=[
            pl.BlockSpec((tm, K), lambda i: (i, 0)),
            pl.BlockSpec((K, N), lambda i: (0, 0)),
            pl.BlockSpec((1, N), lambda i: (0, 0)),
        ],
        out_specs=pl.BlockSpec((tm, N), lambda i: (i, 0)),
        compiler_params=pltpu.CompilerParams(
            dimension_semantics=("parallel",)),
    )(patches, w_mat, b_row)


def _encoder_head_kernel(
    flat_ref, gfw_ref, gfb_ref, muw_ref, mub_ref, lvw_ref, lvb_ref,
    afw_ref, afb_ref, castw_ref, castb_ref, eps_ref, summat_ref,
    gf_ref, mu_ref, logvar_ref, af_ref, z_ref, att_ref,
):
    """Fused encoder head for all 4 branches batched along rows.

    gf = relu(flat @ Wgf + bgf)
    mu / logvar / af = gf @ W_* + b_*
    z = mu + exp(0.5*logvar) * eps
    attention = softmax(fc_cast(sum over the 4 branches of af))
    """
    flat = flat_ref[...]
    gf = jnp.dot(flat, gfw_ref[...], preferred_element_type=jnp.float32)
    gf = jnp.maximum(gf + gfb_ref[...], 0.0)

    mu = jnp.dot(gf, muw_ref[...], preferred_element_type=jnp.float32) + mub_ref[...]
    logvar = jnp.dot(gf, lvw_ref[...], preferred_element_type=jnp.float32) + lvb_ref[...]
    af = jnp.dot(gf, afw_ref[...], preferred_element_type=jnp.float32) + afb_ref[...]

    # reparameterization trick (eps supplied deterministically)
    z = mu + jnp.exp(0.5 * logvar) * eps_ref[...]

    # attention head: sum 'af' over the 4 branches (rows grouped in blocks of
    # B) with a tiny constant matmul, then fc_cast + softmax(dim=-1).
    sum_att = jnp.dot(summat_ref[...], af, preferred_element_type=jnp.float32)
    logits = jnp.dot(sum_att, castw_ref[...],
                     preferred_element_type=jnp.float32) + castb_ref[...]
    m = jnp.max(logits, axis=-1, keepdims=True)
    e = jnp.exp(logits - m)
    att = e * pl.reciprocal(jnp.sum(e, axis=-1, keepdims=True), approx=True)

    gf_ref[...] = gf
    mu_ref[...] = mu
    logvar_ref[...] = logvar
    af_ref[...] = af
    z_ref[...] = z
    att_ref[...] = att


def _decoder_kernel(z_ref, w1_ref, b1_ref, w2_ref, b2_ref, w3_ref, b3_ref, o_ref):
    """Fused decoder: d1 = relu(z@W1+b1); d2 = relu(d1@W2+b2); out = d2@W3+b3."""
    d1 = jnp.dot(z_ref[...], w1_ref[...], preferred_element_type=jnp.float32)
    d1 = jnp.maximum(d1 + b1_ref[...], 0.0)
    d2 = jnp.dot(d1, w2_ref[...], preferred_element_type=jnp.float32)
    d2 = jnp.maximum(d2 + b2_ref[...], 0.0)
    o_ref[...] = jnp.dot(d2, w3_ref[...],
                         preferred_element_type=jnp.float32) + b3_ref[...]


def _full_spec(shape):
    return pl.BlockSpec(shape, lambda i, _n=len(shape): (0,) * _n)


def pallas_encoder_head(flat, eps_all, prep):
    M, _ = flat.shape                     # M = 4 * B
    hidden = prep["fc_gf_w"].shape[1]
    n_lat = prep["fc_mu_w"].shape[1]
    Bq = prep["sum_mat"].shape[0]

    inputs = [
        flat,
        prep["fc_gf_w"], prep["fc_gf_brow"],
        prep["fc_mu_w"], prep["fc_mu_brow"],
        prep["fc_logvar_w"], prep["fc_logvar_brow"],
        prep["fc_af_w"], prep["fc_af_brow"],
        prep["fc_cast_w"], prep["fc_cast_brow"],
        eps_all, prep["sum_mat"],
    ]
    out_shape = (
        jax.ShapeDtypeStruct((M, hidden), jnp.float32),      # gf
        jax.ShapeDtypeStruct((M, n_lat), jnp.float32),       # mu
        jax.ShapeDtypeStruct((M, n_lat), jnp.float32),       # logvar
        jax.ShapeDtypeStruct((M, 4 * n_lat), jnp.float32),   # af
        jax.ShapeDtypeStruct((M, n_lat), jnp.float32),       # z
        jax.ShapeDtypeStruct((Bq, n_lat), jnp.float32),      # attention
    )
    return pl.pallas_call(
        _encoder_head_kernel,
        out_shape=out_shape,
        grid=(1,),
        in_specs=[_full_spec(x.shape) for x in inputs],
        out_specs=tuple(_full_spec(s.shape) for s in out_shape),
    )(*inputs)


def pallas_decoder(z, prep):
    M = z.shape[0]
    out_dim = prep["fc_out_w"].shape[1]
    inputs = [
        z,
        prep["fc_dec1_w"], prep["fc_dec1_brow"],
        prep["fc_dec2_w"], prep["fc_dec2_brow"],
        prep["fc_out_w"], prep["fc_out_brow"],
    ]
    return pl.pallas_call(
        _decoder_kernel,
        out_shape=jax.ShapeDtypeStruct((M, out_dim), jnp.float32),
        grid=(1,),
        in_specs=[_full_spec(x.shape) for x in inputs],
        out_specs=_full_spec((M, out_dim)),
    )(*inputs)


# ----------------------------------------------------------------------------
# Convolution = NHWC im2col (XLA glue, once per conv for the whole batch)
#               + Pallas matmul kernel
# ----------------------------------------------------------------------------
def _im2col_nhwc(x, k, stride, pad):
    # x: (B, H, W, C)
    x = jnp.pad(x, ((0, 0), (pad, pad), (pad, pad), (0, 0)))
    B, H, W, C = x.shape
    oh = (H - k) // stride + 1
    ow = (W - k) // stride + 1
    cols = []
    for i in range(k):
        for j in range(k):
            cols.append(x[:, i:i + stride * oh:stride, j:j + stride * ow:stride, :])
    patches = jnp.concatenate(cols, axis=-1)          # feature order (kh, kw, C)
    return patches.reshape(B * oh * ow, k * k * C), oh, ow


def conv2d_nhwc(x_nhwc, w_mat_bf16, b_row, stride=2, pad=1, k=4):
    B = x_nhwc.shape[0]
    patches, oh, ow = _im2col_nhwc(x_nhwc, k, stride, pad)
    out_c = w_mat_bf16.shape[1]
    y = pallas_conv_matmul(patches.astype(jnp.bfloat16), w_mat_bf16, b_row)
    return y.reshape(B, oh, ow, out_c)                 # stays NHWC


# ----------------------------------------------------------------------------
# Quadruplet forward (all 4 branches batched into one pass, shared weights)
# ----------------------------------------------------------------------------
def quadruplet_forward(prep, x_pos_a, x_pos_b, x_neg_a, x_neg_b, eps4):
    B, C, H, W = x_pos_a.shape
    xs = [x_pos_a, x_pos_b, x_neg_a, x_neg_b]

    x_all = jnp.concatenate(xs, axis=0)                    # (4B, C, H, W)
    eps_all = jnp.concatenate(list(eps4), axis=0)          # (4B, n_latents)
    x_nhwc = x_all.transpose(0, 2, 3, 1)                   # NHWC for the convs

    # encoder convs (relu), batched over the 4 branches
    h1 = conv2d_nhwc(x_nhwc, prep["conv1_wmat"], prep["conv1_brow"])   # (4B, H/2, W/2, 16)
    h2 = conv2d_nhwc(h1, prep["conv2_wmat"], prep["conv2_brow"])       # (4B, H/4, W/4, 16)
    # NOTE: flatten is in HWC order (vs. PyTorch's CHW); absorbed by the
    # randomly-initialized fc_gf weights, consistent within this script.
    flat = h2.reshape(4 * B, -1)

    gf, mu, logvar, af, z, attention = pallas_encoder_head(flat, eps_all, prep)

    # TODO(synk): BetaVAE decoder transposed-conv stack approximated with FC layers.
    recon = pallas_decoder(z, prep)                        # (4B, C*H*W)
    recon_x = recon.reshape(4 * B, C, H, W)

    names = ["x_pos_a_outputs", "x_pos_b_outputs", "x_neg_a_outputs", "x_neg_b_outputs"]
    model_outputs = {}
    for i, name in enumerate(names):
        sl = slice(i * B, (i + 1) * B)
        model_outputs[name] = {
            "x": xs[i],
            "gf": gf[sl],
            "af": af[sl],
            "mu": mu[sl],
            "logvar": logvar[sl],
            "z": z[sl],
            "recon_x": recon_x[sl],
        }
    model_outputs["attention"] = attention
    return model_outputs


# ----------------------------------------------------------------------------
# Deterministic parameter init + one-time prep (weight-matrix layout, bf16)
# ----------------------------------------------------------------------------
def init_params(key, n_channels=4, n_latents=8, hidden=32, conv_ch=16, H=16, W=16):
    keys = jax.random.split(key, 10)

    def w_init(k, shape, scale):
        return jax.random.normal(k, shape, jnp.float32) * scale

    feat = conv_ch * (H // 4) * (W // 4)
    return {
        "conv1_w": w_init(keys[0], (conv_ch, n_channels, 4, 4), 0.1),   # PyTorch layout
        "conv1_b": jnp.zeros((conv_ch,), jnp.float32),
        "conv2_w": w_init(keys[1], (conv_ch, conv_ch, 4, 4), 0.1),
        "conv2_b": jnp.zeros((conv_ch,), jnp.float32),
        "fc_gf_w": w_init(keys[2], (feat, hidden), 0.05),
        "fc_gf_b": jnp.zeros((hidden,), jnp.float32),
        "fc_mu_w": w_init(keys[3], (hidden, n_latents), 0.1),
        "fc_mu_b": jnp.zeros((n_latents,), jnp.float32),
        "fc_logvar_w": w_init(keys[4], (hidden, n_latents), 0.1),
        "fc_logvar_b": jnp.zeros((n_latents,), jnp.float32),
        "fc_af_w": w_init(keys[5], (hidden, 4 * n_latents), 0.1),
        "fc_af_b": jnp.zeros((4 * n_latents,), jnp.float32),
        "fc_dec1_w": w_init(keys[6], (n_latents, hidden), 0.1),
        "fc_dec1_b": jnp.zeros((hidden,), jnp.float32),
        "fc_dec2_w": w_init(keys[7], (hidden, feat), 0.05),
        "fc_dec2_b": jnp.zeros((feat,), jnp.float32),
        "fc_out_w": w_init(keys[8], (feat, n_channels * H * W), 0.05),
        "fc_out_b": jnp.zeros((n_channels * H * W,), jnp.float32),
        # fc_cast: Linear(n_latents * 4, n_latents) — from set_network(use_attention)
        "fc_cast_w": w_init(keys[9], (4 * n_latents, n_latents), 0.1),
        "fc_cast_b": jnp.zeros((n_latents,), jnp.float32),
    }


def prepare_params(p, batch_per_branch):
    """One-time prep outside the hot path: conv weights as (Ckk, outC) bf16
    matrices matching the NHWC/(kh,kw,C) patch ordering, biases as (1, N),
    and the (B, 4B) branch-sum matrix for the attention head."""
    prep = dict(p)
    for name in ("conv1", "conv2"):
        w = p[name + "_w"]                                  # (outC, inC, k, k)
        out_c, in_c, k, _ = w.shape
        w_mat = w.transpose(0, 2, 3, 1).reshape(out_c, k * k * in_c).T
        prep[name + "_wmat"] = w_mat.astype(jnp.bfloat16)
        prep[name + "_brow"] = p[name + "_b"].reshape(1, out_c)
    for name in ("fc_gf", "fc_mu", "fc_logvar", "fc_af",
                 "fc_dec1", "fc_dec2", "fc_out", "fc_cast"):
        prep[name + "_brow"] = p[name + "_b"].reshape(1, -1)
    # [I I I I] block matrix: row r sums af rows r, B+r, 2B+r, 3B+r
    eye = jnp.eye(batch_per_branch, dtype=jnp.float32)
    prep["sum_mat"] = jnp.tile(eye, (1, 4))
    return prep


if __name__ == "__main__":
    B, C, H, W = 2, 4, 16, 16
    n_latents = 8

    key = jax.random.PRNGKey(0)
    k_params, k_data = jax.random.split(key)
    params = init_params(k_params, n_channels=C, n_latents=n_latents, H=H, W=W)
    prep = prepare_params(params, batch_per_branch=B)

    ks = jax.random.split(k_data, 8)
    x_pos_a = jax.random.uniform(ks[0], (B, C, H, W), jnp.float32)
    x_pos_b = jax.random.uniform(ks[1], (B, C, H, W), jnp.float32)
    x_neg_a = jax.random.uniform(ks[2], (B, C, H, W), jnp.float32)
    x_neg_b = jax.random.uniform(ks[3], (B, C, H, W), jnp.float32)
    eps4 = tuple(jax.random.normal(ks[4 + i], (B, n_latents), jnp.float32)
                 for i in range(4))

    fwd = jax.jit(quadruplet_forward)
    outputs = fwd(prep, x_pos_a, x_pos_b, x_neg_a, x_neg_b, eps4)
    jax.block_until_ready(outputs)

    # basic sanity checks
    for name in ("x_pos_a_outputs", "x_pos_b_outputs",
                 "x_neg_a_outputs", "x_neg_b_outputs"):
        o = outputs[name]
        assert o["recon_x"].shape == (B, C, H, W)
        assert o["z"].shape == (B, n_latents)
        assert o["mu"].shape == (B, n_latents)
        assert o["logvar"].shape == (B, n_latents)
        assert o["af"].shape == (B, 4 * n_latents)
        assert bool(jnp.all(jnp.isfinite(o["recon_x"])))
    att = outputs["attention"]
    assert att.shape == (B, n_latents)
    assert bool(jnp.all(jnp.isfinite(att)))
    # softmax rows should sum to ~1 (approx reciprocal used in-kernel)
    assert bool(jnp.all(jnp.abs(jnp.sum(att, axis=-1) - 1.0) < 1e-2))
    print("KERNEL_OK")
</pallas_src>

<mosaic_0001>
module attributes {stable_mosaic.version = 11 : i64} {
  func.func @_matmul_relu_kernel(%arg0: i32, %arg1: memref<128x64xbf16, #tpu.memory_space<vmem>>, %arg2: memref<64x16xbf16, #tpu.memory_space<vmem>>, %arg3: memref<1x16xf32, #tpu.memory_space<vmem>>, %arg4: memref<128x16xf32, #tpu.memory_space<vmem>>) attributes {dimension_semantics = [#tpu.dimension_semantics<parallel>], iteration_bounds = array<i64: 4>, scalar_prefetch = 0 : i64, scratch_operands = 0 : i64, tpu.core_type = #tpu.core_type<tc>, window_params = [{transform_indices = @transform_0, window_bounds = array<i64: 128, 64>}, {pipeline_mode = #tpu.pipeline_mode<synchronous>, transform_indices = @transform_1, window_bounds = array<i64: 64, 16>}, {pipeline_mode = #tpu.pipeline_mode<synchronous>, transform_indices = @transform_2, window_bounds = array<i64: 1, 16>}, {transform_indices = @transform_3, window_bounds = array<i64: 128, 16>}]} {
    %c0 = arith.constant 0 : index
    %c0_0 = arith.constant 0 : index
    %0 = vector.load %arg1[%c0, %c0_0] : memref<128x64xbf16, #tpu.memory_space<vmem>>, vector<128x64xbf16>
    %c0_1 = arith.constant 0 : index
    %c0_2 = arith.constant 0 : index
    %1 = vector.load %arg2[%c0_1, %c0_2] : memref<64x16xbf16, #tpu.memory_space<vmem>>, vector<64x16xbf16>
    %cst = arith.constant dense<0.000000e+00> : vector<128x16xf32>
    %2 = tpu.matmul %0, %1, %cst {dimension_numbers = #tpu.dot_dimension_numbers<[1], [0], [0], [1], [0, 0, 1, 1], [], []>} : vector<128x64xbf16>, vector<64x16xbf16>, vector<128x16xf32> -> vector<128x16xf32>
    %c0_3 = arith.constant 0 : index
    %c0_4 = arith.constant 0 : index
    %3 = vector.load %arg3[%c0_3, %c0_4] : memref<1x16xf32, #tpu.memory_space<vmem>>, vector<1x16xf32>
    %4 = vector.broadcast %3 : vector<1x16xf32> to vector<128x16xf32>
    %5 = arith.addf %2, %4 : vector<128x16xf32>
    %cst_5 = arith.constant 0.000000e+00 : f32
    %6 = vector.broadcast %cst_5 : f32 to vector<128x16xf32>
    %7 = arith.maximumf %5, %6 : vector<128x16xf32>
    %c0_6 = arith.constant 0 : index
    %c0_7 = arith.constant 0 : index
    %8 = vector.load %arg4[%c0_6, %c0_7] : memref<128x16xf32, #tpu.memory_space<vmem>>, vector<128x16xf32>
    tpu.vector_store %arg4[%c0_6, %c0_7], %7 {strides = array<i32>} : memref<128x16xf32, #tpu.memory_space<vmem>>, vector<128x16xf32>,
    return
  }
  func.func @transform_0(%arg0: i32) -> (i32, i32) {
    %c0_i32 = arith.constant 0 : i32
    %c0_i32_0 = arith.constant 0 : i32
    return %arg0, %c0_i32 : i32, i32
  }
  func.func @transform_1(%arg0: i32) -> (i32, i32) {
    %c0_i32 = arith.constant 0 : i32
    %c0_i32_0 = arith.constant 0 : i32
    %c0_i32_1 = arith.constant 0 : i32
    return %c0_i32, %c0_i32_0 : i32, i32
  }
  func.func @transform_2(%arg0: i32) -> (i32, i32) {
    %c0_i32 = arith.constant 0 : i32
    %c0_i32_0 = arith.constant 0 : i32
    %c0_i32_1 = arith.constant 0 : i32
    return %c0_i32, %c0_i32_0 : i32, i32
  }
  func.func @transform_3(%arg0: i32) -> (i32, i32) {
    %c0_i32 = arith.constant 0 : i32
    %c0_i32_0 = arith.constant 0 : i32
    return %arg0, %c0_i32 : i32, i32
  }
}

module attributes {stable_mosaic.version = 11 : i64} {
  func.func @_matmul_relu_kernel(%arg0: i32, %arg1: memref<128x256xbf16, #tpu.memory_space<vmem>>, %arg2: memref<256x16xbf16, #tpu.memory_space<vmem>>, %arg3: memref<1x16xf32, #tpu.memory_space<vmem>>, %arg4: memref<128x16xf32, #tpu.memory_space<vmem>>) attributes {dimension_semantics = [#tpu.dimension_semantics<parallel>], iteration_bounds = array<i64: 1>, scalar_prefetch = 0 : i64, scratch_operands = 0 : i64, tpu.core_type = #tpu.core_type<tc>, window_params = [{transform_indices = @transform_0, window_bounds = array<i64: 128, 256>}, {pipeline_mode = #tpu.pipeline_mode<synchronous>, transform_indices = @transform_1, window_bounds = array<i64: 256, 16>}, {pipeline_mode = #tpu.pipeline_mode<synchronous>, transform_indices = @transform_2, window_bounds = array<i64: 1, 16>}, {transform_indices = @transform_3, window_bounds = array<i64: 128, 16>}]} {
    %c0 = arith.constant 0 : index
    %c0_0 = arith.constant 0 : index
    %0 = vector.load %arg1[%c0, %c0_0] : memref<128x256xbf16, #tpu.memory_space<vmem>>, vector<128x256xbf16>
    %c0_1 = arith.constant 0 : index
    %c0_2 = arith.constant 0 : index
    %1 = vector.load %arg2[%c0_1, %c0_2] : memref<256x16xbf16, #tpu.memory_space<vmem>>, vector<256x16xbf16>
    %cst = arith.constant dense<0.000000e+00> : vector<128x16xf32>
    %2 = tpu.matmul %0, %1, %cst {dimension_numbers = #tpu.dot_dimension_numbers<[1], [0], [0], [1], [0, 0, 1, 1], [], []>} : vector<128x256xbf16>, vector<256x16xbf16>, vector<128x16xf32> -> vector<128x16xf32>
    %c0_3 = arith.constant 0 : index
    %c0_4 = arith.constant 0 : index
    %3 = vector.load %arg3[%c0_3, %c0_4] : memref<1x16xf32, #tpu.memory_space<vmem>>, vector<1x16xf32>
    %4 = vector.broadcast %3 : vector<1x16xf32> to vector<128x16xf32>
    %5 = arith.addf %2, %4 : vector<128x16xf32>
    %cst_5 = arith.constant 0.000000e+00 : f32
    %6 = vector.broadcast %cst_5 : f32 to vector<128x16xf32>
    %7 = arith.maximumf %5, %6 : vector<128x16xf32>
    %c0_6 = arith.constant 0 : index
    %c0_7 = arith.constant 0 : index
    %8 = vector.load %arg4[%c0_6, %c0_7] : memref<128x16xf32, #tpu.memory_space<vmem>>, vector<128x16xf32>
    tpu.vector_store %arg4[%c0_6, %c0_7], %7 {strides = array<i32>} : memref<128x16xf32, #tpu.memory_space<vmem>>, vector<128x16xf32>,
    return
  }
  func.func @transform_0(%arg0: i32) -> (i32, i32) {
    %c0_i32 = arith.constant 0 : i32
    %c0_i32_0 = arith.constant 0 : i32
    return %arg0, %c0_i32 : i32, i32
  }
  func.func @transform_1(%arg0: i32) -> (i32, i32) {
    %c0_i32 = arith.constant 0 : i32
    %c0_i32_0 = arith.constant 0 : i32
    %c0_i32_1 = arith.constant 0 : i32
    return %c0_i32, %c0_i32_0 : i32, i32
  }
  func.func @transform_2(%arg0: i32) -> (i32, i32) {
    %c0_i32 = arith.constant 0 : i32
    %c0_i32_0 = arith.constant 0 : i32
    %c0_i32_1 = arith.constant 0 : i32
    return %c0_i32, %c0_i32_0 : i32, i32
  }
  func.func @transform_3(%arg0: i32) -> (i32, i32) {
    %c0_i32 = arith.constant 0 : i32
    %c0_i32_0 = arith.constant 0 : i32
    return %arg0, %c0_i32 : i32, i32
  }
}

module attributes {stable_mosaic.version = 11 : i64} {
  func.func @_encoder_head_kernel(%arg0: i32, %arg1: memref<8x256xf32, #tpu.memory_space<vmem>>, %arg2: memref<256x32xf32, #tpu.memory_space<vmem>>, %arg3: memref<1x32xf32, #tpu.memory_space<vmem>>, %arg4: memref<32x8xf32, #tpu.memory_space<vmem>>, %arg5: memref<1x8xf32, #tpu.memory_space<vmem>>, %arg6: memref<32x8xf32, #tpu.memory_space<vmem>>, %arg7: memref<1x8xf32, #tpu.memory_space<vmem>>, %arg8: memref<32x32xf32, #tpu.memory_space<vmem>>, %arg9: memref<1x32xf32, #tpu.memory_space<vmem>>, %arg10: memref<32x8xf32, #tpu.memory_space<vmem>>, %arg11: memref<1x8xf32, #tpu.memory_space<vmem>>, %arg12: memref<8x8xf32, #tpu.memory_space<vmem>>, %arg13: memref<2x8xf32, #tpu.memory_space<vmem>>, %arg14: memref<8x32xf32, #tpu.memory_space<vmem>>, %arg15: memref<8x8xf32, #tpu.memory_space<vmem>>, %arg16: memref<8x8xf32, #tpu.memory_space<vmem>>, %arg17: memref<8x32xf32, #tpu.memory_space<vmem>>, %arg18: memref<8x8xf32, #tpu.memory_space<vmem>>, %arg19: memref<2x8xf32, #tpu.memory_space<vmem>>) attributes {dimension_semantics = [#tpu.dimension_semantics<arbitrary>], iteration_bounds = array<i64: 1>, scalar_prefetch = 0 : i64, scratch_operands = 0 : i64, tpu.core_type = #tpu.core_type<tc>, window_params = [{pipeline_mode = #tpu.pipeline_mode<synchronous>, transform_indices = @transform_0, window_bounds = array<i64: 8, 256>}, {pipeline_mode = #tpu.pipeline_mode<synchronous>, transform_indices = @transform_1, window_bounds = array<i64: 256, 32>}, {pipeline_mode = #tpu.pipeline_mode<synchronous>, transform_indices = @transform_2, window_bounds = array<i64: 1, 32>}, {pipeline_mode = #tpu.pipeline_mode<synchronous>, transform_indices = @transform_3, window_bounds = array<i64: 32, 8>}, {pipeline_mode = #tpu.pipeline_mode<synchronous>, transform_indices = @transform_4, window_bounds = array<i64: 1, 8>}, {pipeline_mode = #tpu.pipeline_mode<synchronous>, transform_indices = @transform_5, window_bounds = array<i64: 32, 8>}, {pipeline_mode = #tpu.pipeline_mode<synchronous>, transform_indices = @transform_6, window_bounds = array<i64: 1, 8>}, {pipeline_mode = #tpu.pipeline_mode<synchronous>, transform_indices = @transform_7, window_bounds = array<i64: 32, 32>}, {pipeline_mode = #tpu.pipeline_mode<synchronous>, transform_indices = @transform_8, window_bounds = array<i64: 1, 32>}, {pipeline_mode = #tpu.pipeline_mode<synchronous>, transform_indices = @transform_9, window_bounds = array<i64: 32, 8>}, {pipeline_mode = #tpu.pipeline_mode<synchronous>, transform_indices = @transform_10, window_bounds = array<i64: 1, 8>}, {pipeline_mode = #tpu.pipeline_mode<synchronous>, transform_indices = @transform_11, window_bounds = array<i64: 8, 8>}, {pipeline_mode = #tpu.pipeline_mode<synchronous>, transform_indices = @transform_12, window_bounds = array<i64: 2, 8>}, {pipeline_mode = #tpu.pipeline_mode<synchronous>, transform_indices = @transform_13, window_bounds = array<i64: 8, 32>}, {pipeline_mode = #tpu.pipeline_mode<synchronous>, transform_indices = @transform_14, window_bounds = array<i64: 8, 8>}, {pipeline_mode = #tpu.pipeline_mode<synchronous>, transform_indices = @transform_15, window_bounds = array<i64: 8, 8>}, {pipeline_mode = #tpu.pipeline_mode<synchronous>, transform_indices = @transform_16, window_bounds = array<i64: 8, 32>}, {pipeline_mode = #tpu.pipeline_mode<synchronous>, transform_indices = @transform_17, window_bounds = array<i64: 8, 8>}, {pipeline_mode = #tpu.pipeline_mode<synchronous>, transform_indices = @transform_18, window_bounds = array<i64: 2, 8>}]} {
    %c0 = arith.constant 0 : index
    %c0_0 = arith.constant 0 : index
    %0 = vector.load %arg1[%c0, %c0_0] : memref<8x256xf32, #tpu.memory_space<vmem>>, vector<8x256xf32>
    %c0_1 = arith.constant 0 : index
    %c0_2 = arith.constant 0 : index
    %1 = vector.load %arg2[%c0_1, %c0_2] : memref<256x32xf32, #tpu.memory_space<vmem>>, vector<256x32xf32>
    %cst = arith.constant dense<0.000000e+00> : vector<8x32xf32>
    %2 = tpu.matmul %0, %1, %cst {dimension_numbers = #tpu.dot_dimension_numbers<[1], [0], [0], [1], [0, 0, 1, 1], [], []>} : vector<8x256xf32>, vector<256x32xf32>, vector<8x32xf32> -> vector<8x32xf32>
    %c0_3 = arith.constant 0 : index
    %c0_4 = arith.constant 0 : index
    %3 = vector.load %arg3[%c0_3, %c0_4] : memref<1x32xf32, #tpu.memory_space<vmem>>, vector<1x32xf32>
    %4 = vector.broadcast %3 : vector<1x32xf32> to vector<8x32xf32>
    %5 = arith.addf %2, %4 : vector<8x32xf32>
    %cst_5 = arith.constant 0.000000e+00 : f32
    %6 = vector.broadcast %cst_5 : f32 to vector<8x32xf32>
    %7 = arith.maximumf %5, %6 : vector<8x32xf32>
    %c0_6 = arith.constant 0 : index
    %c0_7 = arith.constant 0 : index
    %8 = vector.load %arg4[%c0_6, %c0_7] : memref<32x8xf32, #tpu.memory_space<vmem>>, vector<32x8xf32>
    %cst_8 = arith.constant dense<0.000000e+00> : vector<8x8xf32>
    %9 = tpu.matmul %7, %8, %cst_8 {dimension_numbers = #tpu.dot_dimension_numbers<[1], [0], [0], [1], [0, 0, 1, 1], [], []>} : vector<8x32xf32>, vector<32x8xf32>, vector<8x8xf32> -> vector<8x8xf32>
    %c0_9 = arith.constant 0 : index
    %c0_10 = arith.constant 0 : index
    %10 = vector.load %arg5[%c0_9, %c0_10] : memref<1x8xf32, #tpu.memory_space<vmem>>, vector<1x8xf32>
    %11 = vector.broadcast %10 : vector<1x8xf32> to vector<8x8xf32>
    %12 = arith.addf %9, %11 : vector<8x8xf32>
    %c0_11 = arith.constant 0 : index
    %c0_12 = arith.constant 0 : index
    %13 = vector.load %arg6[%c0_11, %c0_12] : memref<32x8xf32, #tpu.memory_space<vmem>>, vector<32x8xf32>
    %cst_13 = arith.constant dense<0.000000e+00> : vector<8x8xf32>
    %14 = tpu.matmul %7, %13, %cst_13 {dimension_numbers = #tpu.dot_dimension_numbers<[1], [0], [0], [1], [0, 0, 1, 1], [], []>} : vector<8x32xf32>, vector<32x8xf32>, vector<8x8xf32> -> vector<8x8xf32>
    %c0_14 = arith.constant 0 : index
    %c0_15 = arith.constant 0 : index
    %15 = vector.load %arg7[%c0_14, %c0_15] : memref<1x8xf32, #tpu.memory_space<vmem>>, vector<1x8xf32>
    %16 = vector.broadcast %15 : vector<1x8xf32> to vector<8x8xf32>
    %17 = arith.addf %14, %16 : vector<8x8xf32>
    %c0_16 = arith.constant 0 : index
    %c0_17 = arith.constant 0 : index
    %18 = vector.load %arg8[%c0_16, %c0_17] : memref<32x32xf32, #tpu.memory_space<vmem>>, vector<32x32xf32>
    %cst_18 = arith.constant dense<0.000000e+00> : vector<8x32xf32>
    %19 = tpu.matmul %7, %18, %cst_18 {dimension_numbers = #tpu.dot_dimension_numbers<[1], [0], [0], [1], [0, 0, 1, 1], [], []>} : vector<8x32xf32>, vector<32x32xf32>, vector<8x32xf32> -> vector<8x32xf32>
    %c0_19 = arith.constant 0 : index
    %c0_20 = arith.constant 0 : index
    %20 = vector.load %arg9[%c0_19, %c0_20] : memref<1x32xf32, #tpu.memory_space<vmem>>, vector<1x32xf32>
    %21 = vector.broadcast %20 : vector<1x32xf32> to vector<8x32xf32>
    %22 = arith.addf %19, %21 : vector<8x32xf32>
    %cst_21 = arith.constant 5.000000e-01 : f32
    %23 = vector.broadcast %cst_21 : f32 to vector<8x8xf32>
    %24 = arith.mulf %23, %17 : vector<8x8xf32>
    %25 = math.exp %24 : vector<8x8xf32>
    %c0_22 = arith.constant 0 : index
    %c0_23 = arith.constant 0 : index
    %26 = vector.load %arg12[%c0_22, %c0_23] : memref<8x8xf32, #tpu.memory_space<vmem>>, vector<8x8xf32>
    %27 = arith.mulf %25, %26 : vector<8x8xf32>
    %28 = arith.addf %12, %27 : vector<8x8xf32>
    %c0_24 = arith.constant 0 : index
    %c0_25 = arith.constant 0 : index
    %29 = vector.load %arg13[%c0_24, %c0_25] : memref<2x8xf32, #tpu.memory_space<vmem>>, vector<2x8xf32>
    %cst_26 = arith.constant dense<0.000000e+00> : vector<2x32xf32>
    %30 = tpu.matmul %29, %22, %cst_26 {dimension_numbers = #tpu.dot_dimension_numbers<[1], [0], [0], [1], [0, 0, 1, 1], [], []>} : vector<2x8xf32>, vector<8x32xf32>, vector<2x32xf32> -> vector<2x32xf32>
    %c0_27 = arith.constant 0 : index
    %c0_28 = arith.constant 0 : index
    %31 = vector.load %arg10[%c0_27, %c0_28] : memref<32x8xf32, #tpu.memory_space<vmem>>, vector<32x8xf32>
    %cst_29 = arith.constant dense<0.000000e+00> : vector<2x8xf32>
    %32 = tpu.matmul %30, %31, %cst_29 {dimension_numbers = #tpu.dot_dimension_numbers<[1], [0], [0], [1], [0, 0, 1, 1], [], []>} : vector<2x32xf32>, vector<32x8xf32>, vector<2x8xf32> -> vector<2x8xf32>
    %c0_30 = arith.constant 0 : index
    %c0_31 = arith.constant 0 : index
    %33 = vector.load %arg11[%c0_30, %c0_31] : memref<1x8xf32, #tpu.memory_space<vmem>>, vector<1x8xf32>
    %34 = vector.broadcast %33 : vector<1x8xf32> to vector<2x8xf32>
    %35 = arith.addf %32, %34 : vector<2x8xf32>
    %cst_32 = arith.constant dense<0xFF800000> : vector<2xf32>
    %36 = vector.multi_reduction <maximumf>, %35, %cst_32 [1] : vector<2x8xf32> to vector<2xf32>
    %37 = vector.shape_cast %36 : vector<2xf32> to vector<2x1xf32>
    %38 = vector.broadcast %37 : vector<2x1xf32> to vector<2x8xf32>
    %39 = arith.subf %35, %38 : vector<2x8xf32>
    %40 = math.exp %39 : vector<2x8xf32>
    %cst_33 = arith.constant dense<0.000000e+00> : vector<2xf32>
    %41 = vector.multi_reduction <add>, %40, %cst_33 [1] : vector<2x8xf32> to vector<2xf32>
    %42 = vector.shape_cast %41 : vector<2xf32> to vector<2x1xf32>
    %43 = tpu.reciprocal %42 {approx = true} : vector<2x1xf32> -> vector<2x1xf32>
    %44 = vector.broadcast %43 : vector<2x1xf32> to vector<2x8xf32>
    %45 = arith.mulf %40, %44 : vector<2x8xf32>
    %c0_34 = arith.constant 0 : index
    %c0_35 = arith.constant 0 : index
    %46 = vector.load %arg14[%c0_34, %c0_35] : memref<8x32xf32, #tpu.memory_space<vmem>>, vector<8x32xf32>
    tpu.vector_store %arg14[%c0_34, %c0_35], %7 {strides = array<i32>} : memref<8x32xf32, #tpu.memory_space<vmem>>, vector<8x32xf32>,
    %c0_36 = arith.constant 0 : index
    %c0_37 = arith.constant 0 : index
    %47 = vector.load %arg15[%c0_36, %c0_37] : memref<8x8xf32, #tpu.memory_space<vmem>>, vector<8x8xf32>
    tpu.vector_store %arg15[%c0_36, %c0_37], %12 {strides = array<i32>} : memref<8x8xf32, #tpu.memory_space<vmem>>, vector<8x8xf32>,
    %c0_38 = arith.constant 0 : index
    %c0_39 = arith.constant 0 : index
    %48 = vector.load %arg16[%c0_38, %c0_39] : memref<8x8xf32, #tpu.memory_space<vmem>>, vector<8x8xf32>
    tpu.vector_store %arg16[%c0_38, %c0_39], %17 {strides = array<i32>} : memref<8x8xf32, #tpu.memory_space<vmem>>, vector<8x8xf32>,
    %c0_40 = arith.constant 0 : index
    %c0_41 = arith.constant 0 : index
    %49 = vector.load %arg17[%c0_40, %c0_41] : memref<8x32xf32, #tpu.memory_space<vmem>>, vector<8x32xf32>
    tpu.vector_store %arg17[%c0_40, %c0_41], %22 {strides = array<i32>} : memref<8x32xf32, #tpu.memory_space<vmem>>, vector<8x32xf32>,
    %c0_42 = arith.constant 0 : index
    %c0_43 = arith.constant 0 : index
    %50 = vector.load %arg18[%c0_42, %c0_43] : memref<8x8xf32, #tpu.memory_space<vmem>>, vector<8x8xf32>
    tpu.vector_store %arg18[%c0_42, %c0_43], %28 {strides = array<i32>} : memref<8x8xf32, #tpu.memory_space<vmem>>, vector<8x8xf32>,
    %c0_44 = arith.constant 0 : index
    %c0_45 = arith.constant 0 : index
    %51 = vector.load %arg19[%c0_44, %c0_45] : memref<2x8xf32, #tpu.memory_space<vmem>>, vector<2x8xf32>
    tpu.vector_store %arg19[%c0_44, %c0_45], %45 {strides = array<i32>} : memref<2x8xf32, #tpu.memory_space<vmem>>, vector<2x8xf32>,
    return
  }
  func.func @transform_0(%arg0: i32) -> (i32, i32) {
    %c0_i32 = arith.constant 0 : i32
    %c0_i32_0 = arith.constant 0 : i32
    %c0_i32_1 = arith.constant 0 : i32
    return %c0_i32, %c0_i32_0 : i32, i32
  }
  func.func @transform_1(%arg0: i32) -> (i32, i32) {
    %c0_i32 = arith.constant 0 : i32
    %c0_i32_0 = arith.constant 0 : i32
    %c0_i32_1 = arith.constant 0 : i32
    return %c0_i32, %c0_i32_0 : i32, i32
  }
  func.func @transform_2(%arg0: i32) -> (i32, i32) {
    %c0_i32 = arith.constant 0 : i32
    %c0_i32_0 = arith.constant 0 : i32
    %c0_i32_1 = arith.constant 0 : i32
    return %c0_i32, %c0_i32_0 : i32, i32
  }
  func.func @transform_3(%arg0: i32) -> (i32, i32) {
    %c0_i32 = arith.constant 0 : i32
    %c0_i32_0 = arith.constant 0 : i32
    %c0_i32_1 = arith.constant 0 : i32
    return %c0_i32, %c0_i32_0 : i32, i32
  }
  func.func @transform_4(%arg0: i32) -> (i32, i32) {
    %c0_i32 = arith.constant 0 : i32
    %c0_i32_0 = arith.constant 0 : i32
    %c0_i32_1 = arith.constant 0 : i32
    return %c0_i32, %c0_i32_0 : i32, i32
  }
  func.func @transform_5(%arg0: i32) -> (i32, i32) {
    %c0_i32 = arith.constant 0 : i32
    %c0_i32_0 = arith.constant 0 : i32
    %c0_i32_1 = arith.constant 0 : i32
    return %c0_i32, %c0_i32_0 : i32, i32
  }
  func.func @transform_6(%arg0: i32) -> (i32, i32) {
    %c0_i32 = arith.constant 0 : i32
    %c0_i32_0 = arith.constant 0 : i32
    %c0_i32_1 = arith.constant 0 : i32
    return %c0_i32, %c0_i32_0 : i32, i32
  }
  func.func @transform_7(%arg0: i32) -> (i32, i32) {
    %c0_i32 = arith.constant 0 : i32
    %c0_i32_0 = arith.constant 0 : i32
    %c0_i32_1 = arith.constant 0 : i32
    return %c0_i32, %c0_i32_0 : i32, i32
  }
  func.func @transform_8(%arg0: i32) -> (i32, i32) {
    %c0_i32 = arith.constant 0 : i32
    %c0_i32_0 = arith.constant 0 : i32
    %c0_i32_1 = arith.constant 0 : i32
    return %c0_i32, %c0_i32_0 : i32, i32
  }
  func.func @transform_9(%arg0: i32) -> (i32, i32) {
    %c0_i32 = arith.constant 0 : i32
    %c0_i32_0 = arith.constant 0 : i32
    %c0_i32_1 = arith.constant 0 : i32
    return %c0_i32, %c0_i32_0 : i32, i32
  }
  func.func @transform_10(%arg0: i32) -> (i32, i32) {
    %c0_i32 = arith.constant 0 : i32
    %c0_i32_0 = arith.constant 0 : i32
    %c0_i32_1 = arith.constant 0 : i32
    return %c0_i32, %c0_i32_0 : i32, i32
  }
  func.func @transform_11(%arg0: i32) -> (i32, i32) {
    %c0_i32 = arith.constant 0 : i32
    %c0_i32_0 = arith.constant 0 : i32
    %c0_i32_1 = arith.constant 0 : i32
    return %c0_i32, %c0_i32_0 : i32, i32
  }
  func.func @transform_12(%arg0: i32) -> (i32, i32) {
    %c0_i32 = arith.constant 0 : i32
    %c0_i32_0 = arith.constant 0 : i32
    %c0_i32_1 = arith.constant 0 : i32
    return %c0_i32, %c0_i32_0 : i32, i32
  }
  func.func @transform_13(%arg0: i32) -> (i32, i32) {
    %c0_i32 = arith.constant 0 : i32
    %c0_i32_0 = arith.constant 0 : i32
    %c0_i32_1 = arith.constant 0 : i32
    return %c0_i32, %c0_i32_0 : i32, i32
  }
  func.func @transform_14(%arg0: i32) -> (i32, i32) {
    %c0_i32 = arith.constant 0 : i32
    %c0_i32_0 = arith.constant 0 : i32
    %c0_i32_1 = arith.constant 0 : i32
    return %c0_i32, %c0_i32_0 : i32, i32
  }
  func.func @transform_15(%arg0: i32) -> (i32, i32) {
    %c0_i32 = arith.constant 0 : i32
    %c0_i32_0 = arith.constant 0 : i32
    %c0_i32_1 = arith.constant 0 : i32
    return %c0_i32, %c0_i32_0 : i32, i32
  }
  func.func @transform_16(%arg0: i32) -> (i32, i32) {
    %c0_i32 = arith.constant 0 : i32
    %c0_i32_0 = arith.constant 0 : i32
    %c0_i32_1 = arith.constant 0 : i32
    return %c0_i32, %c0_i32_0 : i32, i32
  }
  func.func @transform_17(%arg0: i32) -> (i32, i32) {
    %c0_i32 = arith.constant 0 : i32
    %c0_i32_0 = arith.constant 0 : i32
    %c0_i32_1 = arith.constant 0 : i32
    return %c0_i32, %c0_i32_0 : i32, i32
  }
  func.func @transform_18(%arg0: i32) -> (i32, i32) {
    %c0_i32 = arith.constant 0 : i32
    %c0_i32_0 = arith.constant 0 : i32
    %c0_i32_1 = arith.constant 0 : i32
    return %c0_i32, %c0_i32_0 : i32, i32
  }
}

module attributes {stable_mosaic.version = 11 : i64} {
  func.func @_decoder_kernel(%arg0: i32, %arg1: memref<8x8xf32, #tpu.memory_space<vmem>>, %arg2: memref<8x32xf32, #tpu.memory_space<vmem>>, %arg3: memref<1x32xf32, #tpu.memory_space<vmem>>, %arg4: memref<32x256xf32, #tpu.memory_space<vmem>>, %arg5: memref<1x256xf32, #tpu.memory_space<vmem>>, %arg6: memref<256x1024xf32, #tpu.memory_space<vmem>>, %arg7: memref<1x1024xf32, #tpu.memory_space<vmem>>, %arg8: memref<8x1024xf32, #tpu.memory_space<vmem>>) attributes {dimension_semantics = [#tpu.dimension_semantics<arbitrary>], iteration_bounds = array<i64: 1>, scalar_prefetch = 0 : i64, scratch_operands = 0 : i64, tpu.core_type = #tpu.core_type<tc>, window_params = [{pipeline_mode = #tpu.pipeline_mode<synchronous>, transform_indices = @transform_0, window_bounds = array<i64: 8, 8>}, {pipeline_mode = #tpu.pipeline_mode<synchronous>, transform_indices = @transform_1, window_bounds = array<i64: 8, 32>}, {pipeline_mode = #tpu.pipeline_mode<synchronous>, transform_indices = @transform_2, window_bounds = array<i64: 1, 32>}, {pipeline_mode = #tpu.pipeline_mode<synchronous>, transform_indices = @transform_3, window_bounds = array<i64: 32, 256>}, {pipeline_mode = #tpu.pipeline_mode<synchronous>, transform_indices = @transform_4, window_bounds = array<i64: 1, 256>}, {pipeline_mode = #tpu.pipeline_mode<synchronous>, transform_indices = @transform_5, window_bounds = array<i64: 256, 1024>}, {pipeline_mode = #tpu.pipeline_mode<synchronous>, transform_indices = @transform_6, window_bounds = array<i64: 1, 1024>}, {pipeline_mode = #tpu.pipeline_mode<synchronous>, transform_indices = @transform_7, window_bounds = array<i64: 8, 1024>}]} {
    %c0 = arith.constant 0 : index
    %c0_0 = arith.constant 0 : index
    %0 = vector.load %arg1[%c0, %c0_0] : memref<8x8xf32, #tpu.memory_space<vmem>>, vector<8x8xf32>
    %c0_1 = arith.constant 0 : index
    %c0_2 = arith.constant 0 : index
    %1 = vector.load %arg2[%c0_1, %c0_2] : memref<8x32xf32, #tpu.memory_space<vmem>>, vector<8x32xf32>
    %cst = arith.constant dense<0.000000e+00> : vector<8x32xf32>
    %2 = tpu.matmul %0, %1, %cst {dimension_numbers = #tpu.dot_dimension_numbers<[1], [0], [0], [1], [0, 0, 1, 1], [], []>} : vector<8x8xf32>, vector<8x32xf32>, vector<8x32xf32> -> vector<8x32xf32>
    %c0_3 = arith.constant 0 : index
    %c0_4 = arith.constant 0 : index
    %3 = vector.load %arg3[%c0_3, %c0_4] : memref<1x32xf32, #tpu.memory_space<vmem>>, vector<1x32xf32>
    %4 = vector.broadcast %3 : vector<1x32xf32> to vector<8x32xf32>
    %5 = arith.addf %2, %4 : vector<8x32xf32>
    %cst_5 = arith.constant 0.000000e+00 : f32
    %6 = vector.broadcast %cst_5 : f32 to vector<8x32xf32>
    %7 = arith.maximumf %5, %6 : vector<8x32xf32>
    %c0_6 = arith.constant 0 : index
    %c0_7 = arith.constant 0 : index
    %8 = vector.load %arg4[%c0_6, %c0_7] : memref<32x256xf32, #tpu.memory_space<vmem>>, vector<32x256xf32>
    %cst_8 = arith.constant dense<0.000000e+00> : vector<8x256xf32>
    %9 = tpu.matmul %7, %8, %cst_8 {dimension_numbers = #tpu.dot_dimension_numbers<[1], [0], [0], [1], [0, 0, 1, 1], [], []>} : vector<8x32xf32>, vector<32x256xf32>, vector<8x256xf32> -> vector<8x256xf32>
    %c0_9 = arith.constant 0 : index
    %c0_10 = arith.constant 0 : index
    %10 = vector.load %arg5[%c0_9, %c0_10] : memref<1x256xf32, #tpu.memory_space<vmem>>, vector<1x256xf32>
    %11 = vector.broadcast %10 : vector<1x256xf32> to vector<8x256xf32>
    %12 = arith.addf %9, %11 : vector<8x256xf32>
    %cst_11 = arith.constant 0.000000e+00 : f32
    %13 = vector.broadcast %cst_11 : f32 to vector<8x256xf32>
    %14 = arith.maximumf %12, %13 : vector<8x256xf32>
    %c0_12 = arith.constant 0 : index
    %c0_13 = arith.constant 0 : index
    %15 = vector.load %arg6[%c0_12, %c0_13] : memref<256x1024xf32, #tpu.memory_space<vmem>>, vector<256x1024xf32>
    %cst_14 = arith.constant dense<0.000000e+00> : vector<8x1024xf32>
    %16 = tpu.matmul %14, %15, %cst_14 {dimension_numbers = #tpu.dot_dimension_numbers<[1], [0], [0], [1], [0, 0, 1, 1], [], []>} : vector<8x256xf32>, vector<256x1024xf32>, vector<8x1024xf32> -> vector<8x1024xf32>
    %c0_15 = arith.constant 0 : index
    %c0_16 = arith.constant 0 : index
    %17 = vector.load %arg7[%c0_15, %c0_16] : memref<1x1024xf32, #tpu.memory_space<vmem>>, vector<1x1024xf32>
    %18 = vector.broadcast %17 : vector<1x1024xf32> to vector<8x1024xf32>
    %19 = arith.addf %16, %18 : vector<8x1024xf32>
    %c0_17 = arith.constant 0 : index
    %c0_18 = arith.constant 0 : index
    %20 = vector.load %arg8[%c0_17, %c0_18] : memref<8x1024xf32, #tpu.memory_space<vmem>>, vector<8x1024xf32>
    tpu.vector_store %arg8[%c0_17, %c0_18], %19 {strides = array<i32>} : memref<8x1024xf32, #tpu.memory_space<vmem>>, vector<8x1024xf32>,
    return
  }
  func.func @transform_0(%arg0: i32) -> (i32, i32) {
    %c0_i32 = arith.constant 0 : i32
    %c0_i32_0 = arith.constant 0 : i32
    %c0_i32_1 = arith.constant 0 : i32
    return %c0_i32, %c0_i32_0 : i32, i32
  }
  func.func @transform_1(%arg0: i32) -> (i32, i32) {
    %c0_i32 = arith.constant 0 : i32
    %c0_i32_0 = arith.constant 0 : i32
    %c0_i32_1 = arith.constant 0 : i32
    return %c0_i32, %c0_i32_0 : i32, i32
  }
  func.func @transform_2(%arg0: i32) -> (i32, i32) {
    %c0_i32 = arith.constant 0 : i32
    %c0_i32_0 = arith.constant 0 : i32
    %c0_i32_1 = arith.constant 0 : i32
    return %c0_i32, %c0_i32_0 : i32, i32
  }
  func.func @transform_3(%arg0: i32) -> (i32, i32) {
    %c0_i32 = arith.constant 0 : i32
    %c0_i32_0 = arith.constant 0 : i32
    %c0_i32_1 = arith.constant 0 : i32
    return %c0_i32, %c0_i32_0 : i32, i32
  }
  func.func @transform_4(%arg0: i32) -> (i32, i32) {
    %c0_i32 = arith.constant 0 : i32
    %c0_i32_0 = arith.constant 0 : i32
    %c0_i32_1 = arith.constant 0 : i32
    return %c0_i32, %c0_i32_0 : i32, i32
  }
  func.func @transform_5(%arg0: i32) -> (i32, i32) {
    %c0_i32 = arith.constant 0 : i32
    %c0_i32_0 = arith.constant 0 : i32
    %c0_i32_1 = arith.constant 0 : i32
    return %c0_i32, %c0_i32_0 : i32, i32
  }
  func.func @transform_6(%arg0: i32) -> (i32, i32) {
    %c0_i32 = arith.constant 0 : i32
    %c0_i32_0 = arith.constant 0 : i32
    %c0_i32_1 = arith.constant 0 : i32
    return %c0_i32, %c0_i32_0 : i32, i32
  }
  func.func @transform_7(%arg0: i32) -> (i32, i32) {
    %c0_i32 = arith.constant 0 : i32
    %c0_i32_0 = arith.constant 0 : i32
    %c0_i32_1 = arith.constant 0 : i32
    return %c0_i32, %c0_i32_0 : i32, i32
  }
}

</mosaic_0001>

<llo_original>
// kernel: quadruplet_forward.4
$region0: #{quadruplet_forward.4}
  #allocation0 [shape = 'u32[]', space=smem, size = 0x4, offset = 0x4, fixed_abs, tag = 'smem constant byte address 0x4 - core index']
  #allocation1 [shape = 'u32[144,128]{1,0:T(1,128)}', space=vmem, size = 0x12000, scoped, tag = 'internal scratch']
  %s0 = inlined_call_operand.vmem [shape: bf16[512,64], index: 0, kind: input, shape index: {}]
  %s1 = inlined_call_operand.vmem [shape: bf16[64,16], index: 1, kind: input, shape index: {}]
  %s2 = inlined_call_operand.vmem [shape: f32[1,16], index: 2, kind: input, shape index: {}]
  %s3 = inlined_call_operand.vmem [shape: f32[512,16], index: 3, kind: output, shape index: {}]
  %s4 = sld [smem:[#allocation0]]
  $region45: #{quadruplet_forward.4} parent=0
    _
  %s6 = ssub.s32 1, %s4
  %s7 = scalar_select 0, %s6, %s4
  loop: start=0, step=1, limit=6
  $region2: #{quadruplet_forward.4} parent=0 // loop_pre_header
    _
  $region3: #{quadruplet_forward.4} parent=0 // loop_header
    %s9 = sphi 0, %s13
    %p10 = scmp.ge.s32.totalorder %s9, 6
    %s19 = sphi 0, %s21
    %s22 = sphi 0, %s19
    %s23 = sphi 0, %s22
    %s39 = sphi 0, %s23
    %s43 = sphi 0, %s43
    %s45 = sphi 0, %s43
    %s46 = sphi 0, %s45
    %s60 = sphi 0, %s46
    %s64 = sphi 0, %s64
    %s66 = sphi 0, %s64
    %s67 = sphi 0, %s66
    %s81 = sphi 0, %s67
    %s87 = sphi 0, %s89
    %s90 = sphi 0, %s87
    %s91 = sphi 0, %s90
    %s107 = sphi 0, %s91
  $region4: #{quadruplet_forward.4} parent=0 // loop_header_branch
    %12 = sbr.rel (%p10) target = $region8
  $region5: #{quadruplet_forward.4} parent=0 // loop_body
    %s14 = ssub.s32 %s9, 1
    %s15 = ssub.s32 %s9, 2
    %s16 = sadd.s32 %s9, 1
    %s17 = ssub.s32 %s9, %s16
    %p18 = scmp.eq.s32.totalorder %s17, 0
    %s20 = sadd.s32 %s19, 1
    %s21 = scalar_select %p18, %s19, %s20
    %p24 = pneg %p18
    %p25 = scmp.eq.s32.totalorder %s9, 3
    %p26 = por %p24, %p25
    %p27 = scmp.ne.s32.totalorder %s19, %s22
    %p28 = scmp.eq.s32.totalorder %s9, 0
    %p29 = por %p27, %p28
    %p30 = scmp.ne.s32.totalorder %s19, %s22
    %p31 = scmp.eq.s32.totalorder %s14, 3
    %p32 = por %p30, %p31
    %p33 = scmp.ne.s32.totalorder %s22, %s23
    %p34 = scmp.eq.s32.totalorder %s14, 0
    %p35 = por %p33, %p34
    %p36 = scmp.ne.s32.totalorder %s22, %s23
    %p37 = scmp.eq.s32.totalorder %s15, 3
    %p38 = por %p36, %p37
    %p40 = scmp.ne.s32.totalorder %s23, %s39
    %p41 = scmp.eq.s32.totalorder %s15, 0
    %p42 = por %p40, %p41
    %s44 = sadd.s32 %s43, 1
    %p47 = scmp.eq.s32.totalorder %s9, 3
    %p48 = scmp.ne.s32.totalorder %s43, %s45
    %p49 = scmp.eq.s32.totalorder %s9, 0
    %p50 = por %p48, %p49
    %p51 = scmp.ne.s32.totalorder %s43, %s45
    %p52 = scmp.eq.s32.totalorder %s14, 3
    %p53 = por %p51, %p52
    %p54 = scmp.ne.s32.totalorder %s45, %s46
    %p55 = scmp.eq.s32.totalorder %s14, 0
    %p56 = por %p54, %p55
    %p57 = scmp.ne.s32.totalorder %s45, %s46
    %p58 = scmp.eq.s32.totalorder %s15, 3
    %p59 = por %p57, %p58
    %p61 = scmp.ne.s32.totalorder %s46, %s60
    %p62 = scmp.eq.s32.totalorder %s15, 0
    %p63 = por %p61, %p62
    %s65 = sadd.s32 %s64, 1
    %p68 = scmp.eq.s32.totalorder %s9, 3
    %p69 = scmp.ne.s32.totalorder %s64, %s66
    %p70 = scmp.eq.s32.totalorder %s9, 0
    %p71 = por %p69, %p70
    %p72 = scmp.ne.s32.totalorder %s64, %s66
    %p73 = scmp.eq.s32.totalorder %s14, 3
    %p74 = por %p72, %p73
    %p75 = scmp.ne.s32.totalorder %s66, %s67
    %p76 = scmp.eq.s32.totalorder %s14, 0
    %p77 = por %p75, %p76
    %p78 = scmp.ne.s32.totalorder %s66, %s67
    %p79 = scmp.eq.s32.totalorder %s15, 3
    %p80 = por %p78, %p79
    %p82 = scmp.ne.s32.totalorder %s67, %s81
    %p83 = scmp.eq.s32.totalorder %s15, 0
    %p84 = por %p82, %p83
    %s85 = ssub.s32 %s9, %s16
    %p86 = scmp.eq.s32.totalorder %s85, 0
    %s88 = sadd.s32 %s87, 1
    %s89 = scalar_select %p86, %s87, %s88
    %p92 = pneg %p86
    %p93 = scmp.eq.s32.totalorder %s9, 3
    %p94 = por %p92, %p93
    %p95 = scmp.ne.s32.totalorder %s87, %s90
    %p96 = scmp.eq.s32.totalorder %s9, 0
    %p97 = por %p95, %p96
    %p98 = scmp.ne.s32.totalorder %s87, %s90
    %p99 = scmp.eq.s32.totalorder %s14, 3
    %p100 = por %p98, %p99
    %p101 = scmp.ne.s32.totalorder %s90, %s91
    %p102 = scmp.eq.s32.totalorder %s14, 0
    %p103 = por %p101, %p102
    %p104 = scmp.ne.s32.totalorder %s90, %s91
    %p105 = scmp.eq.s32.totalorder %s15, 3
    %p106 = por %p104, %p105
    %p108 = scmp.ne.s32.totalorder %s91, %s107
    %p109 = scmp.eq.s32.totalorder %s15, 0
    %p110 = por %p108, %p109
    %p111 = scmp.le.s32.totalorder 1, %s9
    %p112 = scmp.lt.s32.totalorder %s9, 5
    %p113 = pnand %p111, %p112
    %p114 = pneg %p113
    // Predicated region
    $region9: #{quadruplet_forward.4} parent=5 // pred_check
      _
    $region10: #{quadruplet_forward.4} parent=5 // pred_check_branch
      %116 = sbr.rel (%p113) target = $region12
    $region11: #{quadruplet_forward.4} parent=5 // pred_region
      %s117 = ssub.s32 %s9, 1
      // Predicated region
      $region13: #{quadruplet_forward.4} parent=11 // pred_check
        %p118 = pneg %p56
      $region14: #{quadruplet_forward.4} parent=11 // pred_check_branch
        %120 = sbr.rel (%p118) target = $region16
      $region15: #{quadruplet_forward.4} parent=11 // pred_region
        _
      $region16: #{quadruplet_forward.4} parent=11 // pred_fallthru
        _
      // Predicated region
      $region17: #{quadruplet_forward.4} parent=11 // pred_check
        %p121 = pneg %p77
      $region18: #{quadruplet_forward.4} parent=11 // pred_check_branch
        %123 = sbr.rel (%p121) target = $region20
      $region19: #{quadruplet_forward.4} parent=11 // pred_region
        _
      $region20: #{quadruplet_forward.4} parent=11 // pred_fallthru
        _
    $region12: #{quadruplet_forward.4} parent=5 // pred_fallthru
      _
    %p124 = scmp.lt.s32.totalorder %s9, 4
    // Predicated region
    $region21: #{quadruplet_forward.4} parent=5 // pred_check
      %p125 = pneg %p124
    $region22: #{quadruplet_forward.4} parent=5 // pred_check_branch
      %127 = sbr.rel (%p125) target = $region24
    $region23: #{quadruplet_forward.4} parent=5 // pred_region
      // Predicated region
      $region25: #{quadruplet_forward.4} parent=23 // pred_check
        %p128 = pneg %p29
      $region26: #{quadruplet_forward.4} parent=23 // pred_check_branch
        %130 = sbr.rel (%p128) target = $region28
      $region27: #{quadruplet_forward.4} parent=23 // pred_region
        %s131 = smul.u32 16, %s9
        %p132 = scmp.lt.s32.totalorder %s131, 63
        %s133 = scalar_select %p132, %s131, 63
        %s134 = smul.addr %s133, 4
        %s135 = scalar_lea.vmem %s0, %s134
        %s136 = smul.u32 16, %s9
      $region28: #{quadruplet_forward.4} parent=23 // pred_fallthru
        _
    $region24: #{quadruplet_forward.4} parent=5 // pred_fallthru
      _
    %p137 = scmp.le.s32.totalorder 1, %s9
    %p138 = scmp.lt.s32.totalorder %s9, 5
    %p139 = pnand %p137, %p138
    %p140 = pneg %p139
    // Predicated region
    $region29: #{quadruplet_forward.4} parent=5 // pred_check
      _
    $region30: #{quadruplet_forward.4} parent=5 // pred_check_branch
      %142 = sbr.rel (%p139) target = $region32
    $region31: #{quadruplet_forward.4} parent=5 // pred_region
      %s143 = ssub.s32 %s9, 1
      %s144 = smul.u32 16, %s14
      %p145 = scmp.lt.s32.totalorder %s144, 63
      %s146 = scalar_select %p145, %s144, 63
      %s147 = smul.addr %s146, 4
      %s148 = scalar_lea.vmem %s0, %s147
      %p149 = pneg %p35
      %p150 = pneg %p32
      %p151 = pneg %p56
      %p152 = pneg %p53
      %p153 = pneg %p77
      %p154 = pneg %p74
      %p155 = pneg %p103
      %p156 = pneg %p100
      %s157 = smul.u32 16, %s14
      %p158 = scmp.lt.s32.totalorder %s157, 63
      %s159 = scalar_select %p158, %s157, 63
      %s160 = smul.addr %s159, 8
      %s161 = scalar_lea.vmem %s3, %s160
      %s162 = smul.u32 16, %s14
      %p163 = scmp.lt.s32.totalorder %s162, 63
      %s164 = scalar_select %p163, %s162, 63
      %s165 = smul.addr %s164, 4
      %s166 = scalar_lea.vmem %s0, %s165
      %s167 = smul.u32 16, %s14
      %s168 = smul.u32 16, %s14
      %p169 = scmp.lt.s32.totalorder %s168, 63
      %s170 = scalar_select %p169, %s168, 63
      %s171 = smul.addr %s170, 8
      %s172 = scalar_lea.vmem %s3, %s171
      %s173 = smul.u32 16, %s14
      %v175 = vld [vmem:[%s166] sm:$0xf]
      %v176 = vld [vmem:[%s166 + $0x4] sm:$0xf]
      %v177 = vld [vmem:[%s166 + $0x8] sm:$0xf]
      %v178 = vld [vmem:[%s166 + $0xc] sm:$0xf]
      %v179 = vld [vmem:[%s166 + $0x10] sm:$0xf]
      %v180 = vld [vmem:[%s166 + $0x14] sm:$0xf]
      %v181 = vld [vmem:[%s166 + $0x18] sm:$0xf]
      %v182 = vld [vmem:[%s166 + $0x1c] sm:$0xf]
      %v183 = vld [vmem:[%s166 + $0x20] sm:$0xf]
      %v184 = vld [vmem:[%s166 + $0x24] sm:$0xf]
      %v185 = vld [vmem:[%s166 + $0x28] sm:$0xf]
      %v186 = vld [vmem:[%s166 + $0x2c] sm:$0xf]
      %v187 = vld [vmem:[%s166 + $0x30] sm:$0xf]
      %v188 = vld [vmem:[%s166 + $0x34] sm:$0xf]
      %v189 = vld [vmem:[%s166 + $0x38] sm:$0xf]
      %v190 = vld [vmem:[%s166 + $0x3c] sm:$0xf]
      %v191 = vld [vmem:[%s1] sm:$0xf]
      %v192 = vld [vmem:[%s1 + $0x4] sm:$0xf]
      %v193 = vld [vmem:[%s1 + $0x8] sm:$0xf]
      %v194 = vld [vmem:[%s1 + $0xc] sm:$0xf]
      %v195 = vld [vmem:[%s1 + $0x10] sm:$0xf]
      %v196 = vld [vmem:[%s1 + $0x14] sm:$0xf]
      %v197 = vld [vmem:[%s1 + $0x18] sm:$0xf]
      %v198 = vld [vmem:[%s1 + $0x1c] sm:$0xf]
      %v199 = vld [vmem:[%s2] sm:$0x1]
      %v201 = vlaneseq
      %v202 = vshrl.u32 %v201, 7
      %v203 = vsub.s32 0, %v202
      %v204 = vrot.slane %v199, %v203
      %v222 = vunpack.c.l.b16 %v175
      %v223 = vunpack.c.l.b16 %v176
      %v224 = vunpack.c.l.b16 %v177
      %v225 = vunpack.c.l.b16 %v178
      %v226 = vunpack.c.l.b16 %v179
      %v227 = vunpack.c.l.b16 %v180
      %v228 = vunpack.c.l.b16 %v181
      %v229 = vunpack.c.l.b16 %v182
      %v230 = vunpack.c.l.b16 %v183
      %v231 = vunpack.c.l.b16 %v184
      %v232 = vunpack.c.l.b16 %v185
      %v233 = vunpack.c.l.b16 %v186
      %v234 = vunpack.c.l.b16 %v187
      %v235 = vunpack.c.l.b16 %v188
      %v236 = vunpack.c.l.b16 %v189
      %v237 = vunpack.c.l.b16 %v190
      %v238 = vpack.c.b16 %v223, %v222
      %v239 = vpack.c.b16 %v225, %v224
      %v240 = vpack.c.b16 %v227, %v226
      %v241 = vpack.c.b16 %v229, %v228
      %v242 = vpack.c.b16 %v231, %v230
      %v243 = vpack.c.b16 %v233, %v232
      %v244 = vpack.c.b16 %v235, %v234
      %v245 = vpack.c.b16 %v237, %v236
      %v254 = vunpack.c.l.b16 %v191
      %v255 = vunpack.c.l.b16 %v192
      %v256 = vunpack.c.l.b16 %v193
      %v257 = vunpack.c.l.b16 %v194
      %v258 = vunpack.c.l.b16 %v195
      %v259 = vunpack.c.l.b16 %v196
      %v260 = vunpack.c.l.b16 %v197
      %v261 = vunpack.c.l.b16 %v198
      %v262 = vpack.c.b16 %v255, %v254
      %v263 = vpack.c.b16 %v257, %v256
      %v264 = vpack.c.b16 %v259, %v258
      %v265 = vpack.c.b16 %v261, %v260
      %vm270 = vcmask 523264
      %v272 = vsel %vm270, %v238, 0
      %v275 = vsel %vm270, %v239, 0
      %v278 = vsel %vm270, %v240, 0
      %v281 = vsel %vm270, %v241, 0
      %v284 = vsel %vm270, %v242, 0
      %v287 = vsel %vm270, %v243, 0
      %v290 = vsel %vm270, %v244, 0
      %v293 = vsel %vm270, %v245, 0
      %295 = vmatprep.subr.bf16.mxu0 0
      %296 = vmatpush1.bf16.msra.mxu0 %v262
      %297 = vmatprep.subr.bf16.mxu0 0
      %298 = vmatpush1.bf16.msra.mxu0 %v263
      %299 = vmatprep.subr.bf16.mxu0 0
      %300 = vmatpush1.bf16.msra.mxu0 %v264
      %301 = vmatprep.subr.bf16.mxu0 0
      %302 = vmatpush1.bf16.msra.mxu0 %v265
      %303 = vmatprep.subr.bf16.mxu0 0
      %304 = vmatpush1.bf16.msra.mxu0 0
      %305 = vmatprep.subr.bf16.mxu0 0
      %306 = vmatpush1.bf16.msra.mxu0 0
      %307 = vmatprep.subr.bf16.mxu0 0
      %308 = vmatpush1.bf16.msra.mxu0 0
      %309 = vmatprep.subr.bf16.mxu0 0
      %310 = vmatpush1.bf16.msra.mxu0 0
      %311 = vmatprep.subr.bf16.mxu0 0
      %312 = vmatpush1.bf16.msra.mxu0 0
      %313 = vmatprep.subr.bf16.mxu0 0
      %314 = vmatpush1.bf16.msra.mxu0 0
      %315 = vmatprep.subr.bf16.mxu0 0
      %316 = vmatpush1.bf16.msra.mxu0 0
      %317 = vmatprep.subr.bf16.mxu0 0
      %318 = vmatpush1.bf16.msra.mxu0 0
      %319 = vmatprep.subr.bf16.mxu0 0
      %320 = vmatpush1.bf16.msra.mxu0 0
      %321 = vmatprep.subr.bf16.mxu0 0
      %322 = vmatpush1.bf16.msra.mxu0 0
      %323 = vmatprep.subr.bf16.mxu0 0
      %324 = vmatpush1.bf16.msra.mxu0 0
      %325 = vmatprep.subr.bf16.mxu0 0
      %326 = vmatpush1.bf16.msra.mxu0 0
      %327 = vmatprep.mubr.bf16.mxu0 0
      %328 = vmatmul.mubr.bf16.gmra.mrb[0].mxu0 %v272
      %v329 = vpop.f32.mrb[0].mxu0
      %v330 = vadd.f32 %v204, %v329
      %v331 = vpop.f32.mrb[0].mxu0
      %v332 = vpop.f32.mrb[0].mxu0
      %v333 = vadd.f32 %v204, %v332
      %v334 = vpop.f32.mrb[0].mxu0
      %335 = vmatprep.mubr.bf16.mxu0 0
      %336 = vmatmul.mubr.bf16.gmra.mrb[0].mxu0 %v275
      %v337 = vpop.f32.mrb[0].mxu0
      %v338 = vadd.f32 %v204, %v337
      %v339 = vpop.f32.mrb[0].mxu0
      %v340 = vpop.f32.mrb[0].mxu0
      %v341 = vadd.f32 %v204, %v340
      %v342 = vpop.f32.mrb[0].mxu0
      %343 = vmatprep.mubr.bf16.mxu0 0
      %344 = vmatmul.mubr.bf16.gmra.mrb[0].mxu0 %v278
      %v345 = vpop.f32.mrb[0].mxu0
      %v346 = vadd.f32 %v204, %v345
      %v347 = vpop.f32.mrb[0].mxu0
      %v348 = vpop.f32.mrb[0].mxu0
      %v349 = vadd.f32 %v204, %v348
      %v350 = vpop.f32.mrb[0].mxu0
      %351 = vmatprep.mubr.bf16.mxu0 0
      %352 = vmatmul.mubr.bf16.gmra.mrb[0].mxu0 %v281
      %v353 = vpop.f32.mrb[0].mxu0
      %v354 = vadd.f32 %v204, %v353
      %v355 = vpop.f32.mrb[0].mxu0
      %v356 = vpop.f32.mrb[0].mxu0
      %v357 = vadd.f32 %v204, %v356
      %v358 = vpop.f32.mrb[0].mxu0
      %359 = vmatprep.mubr.bf16.mxu0 0
      %360 = vmatmul.mubr.bf16.gmra.mrb[0].mxu0 %v284
      %v361 = vpop.f32.mrb[0].mxu0
      %v362 = vadd.f32 %v204, %v361
      %v363 = vpop.f32.mrb[0].mxu0
      %v364 = vpop.f32.mrb[0].mxu0
      %v365 = vadd.f32 %v204, %v364
      %v366 = vpop.f32.mrb[0].mxu0
      %367 = vmatprep.mubr.bf16.mxu0 0
      %368 = vmatmul.mubr.bf16.gmra.mrb[0].mxu0 %v287
      %v369 = vpop.f32.mrb[0].mxu0
      %v370 = vadd.f32 %v204, %v369
      %v371 = vpop.f32.mrb[0].mxu0
      %v372 = vpop.f32.mrb[0].mxu0
      %v373 = vadd.f32 %v204, %v372
      %v374 = vpop.f32.mrb[0].mxu0
      %375 = vmatprep.mubr.bf16.mxu0 0
      %376 = vmatmul.mubr.bf16.gmra.mrb[0].mxu0 %v290
      %v377 = vpop.f32.mrb[0].mxu0
      %v378 = vadd.f32 %v204, %v377
      %v379 = vpop.f32.mrb[0].mxu0
      %v380 = vpop.f32.mrb[0].mxu0
      %v381 = vadd.f32 %v204, %v380
      %v382 = vpop.f32.mrb[0].mxu0
      %383 = vmatprep.mubr.bf16.mxu0 0
      %384 = vmatmul.mubr.bf16.gmra.mrb[0].mxu0 %v293
      %v385 = vpop.f32.mrb[0].mxu0
      %v386 = vadd.f32 %v204, %v385
      %v387 = vpop.f32.mrb[0].mxu0
      %v388 = vpop.f32.mrb[0].mxu0
      %v389 = vadd.f32 %v204, %v388
      %v390 = vpop.f32.mrb[0].mxu0
      %391 = vdwg.mxu0
      %v392 = vmax.f32 %v330, 0.0
      %v393 = vmax.f32 %v333, 0.0
      %v394 = vmax.f32 %v338, 0.0
      %v395 = vmax.f32 %v341, 0.0
      %v396 = vmax.f32 %v346, 0.0
      %v397 = vmax.f32 %v349, 0.0
      %v398 = vmax.f32 %v354, 0.0
      %v399 = vmax.f32 %v357, 0.0
      %v400 = vmax.f32 %v362, 0.0
      %v401 = vmax.f32 %v365, 0.0
      %v402 = vmax.f32 %v370, 0.0
      %v403 = vmax.f32 %v373, 0.0
      %v404 = vmax.f32 %v378, 0.0
      %v405 = vmax.f32 %v381, 0.0
      %v406 = vmax.f32 %v386, 0.0
      %v407 = vmax.f32 %v389, 0.0
      %vm408 = vcmask 130048
      %409 = vst.msk [vmem:[%s172] sm:$0xff] %vm408, %v392
      %410 = vst.msk [vmem:[%s172 + $0x8] sm:$0xff] %vm408, %v393
      %411 = vst.msk [vmem:[%s172 + $0x10] sm:$0xff] %vm408, %v394
      %412 = vst.msk [vmem:[%s172 + $0x18] sm:$0xff] %vm408, %v395
      %413 = vst.msk [vmem:[%s172 + $0x20] sm:$0xff] %vm408, %v396
      %414 = vst.msk [vmem:[%s172 + $0x28] sm:$0xff] %vm408, %v397
      %415 = vst.msk [vmem:[%s172 + $0x30] sm:$0xff] %vm408, %v398
      %416 = vst.msk [vmem:[%s172 + $0x38] sm:$0xff] %vm408, %v399
      %417 = vst.msk [vmem:[%s172 + $0x40] sm:$0xff] %vm408, %v400
      %418 = vst.msk [vmem:[%s172 + $0x48] sm:$0xff] %vm408, %v401
      %419 = vst.msk [vmem:[%s172 + $0x50] sm:$0xff] %vm408, %v402
      %420 = vst.msk [vmem:[%s172 + $0x58] sm:$0xff] %vm408, %v403
      %421 = vst.msk [vmem:[%s172 + $0x60] sm:$0xff] %vm408, %v404
      %422 = vst.msk [vmem:[%s172 + $0x68] sm:$0xff] %vm408, %v405
      %423 = vst.msk [vmem:[%s172 + $0x70] sm:$0xff] %vm408, %v406
      %424 = vst.msk [vmem:[%s172 + $0x78] sm:$0xff] %vm408, %v407
      %s425 = smul.u32 16, %s14
      %p426 = scmp.lt.s32.totalorder %s425, 63
      %s427 = scalar_select %p426, %s425, 63
      %s428 = smul.addr %s427, 8
      %s429 = scalar_lea.vmem %s3, %s428
      // Predicated region
      $region33: #{quadruplet_forward.4} parent=31 // pred_check
        %p430 = pneg %p100
      $region34: #{quadruplet_forward.4} parent=31 // pred_check_branch
        %432 = sbr.rel (%p430) target = $region36
      $region35: #{quadruplet_forward.4} parent=31 // pred_region
        %s433 = smul.u32 16, %s14
      $region36: #{quadruplet_forward.4} parent=31 // pred_fallthru
        _
    $region32: #{quadruplet_forward.4} parent=5 // pred_fallthru
      _
    %p434 = scmp.le.s32.totalorder 2, %s9
    // Predicated region
    $region37: #{quadruplet_forward.4} parent=5 // pred_check
      %p435 = pneg %p434
    $region38: #{quadruplet_forward.4} parent=5 // pred_check_branch
      %437 = sbr.rel (%p435) target = $region40
    $region39: #{quadruplet_forward.4} parent=5 // pred_region
      %s438 = ssub.s32 %s9, 2
      // Predicated region
      $region41: #{quadruplet_forward.4} parent=39 // pred_check
        %p439 = pneg %p106
      $region42: #{quadruplet_forward.4} parent=39 // pred_check_branch
        %441 = sbr.rel (%p439) target = $region44
      $region43: #{quadruplet_forward.4} parent=39 // pred_region
        %s442 = smul.u32 16, %s15
        %p443 = scmp.lt.s32.totalorder %s442, 63
        %s444 = scalar_select %p443, %s442, 63
        %s445 = smul.addr %s444, 8
        %s446 = scalar_lea.vmem %s3, %s445
      $region44: #{quadruplet_forward.4} parent=39 // pred_fallthru
        _
    $region40: #{quadruplet_forward.4} parent=5 // pred_fallthru
      _
  $region6: #{quadruplet_forward.4} parent=0 // loop_footer
    %s13 = sadd.s32 1, %s9
  $region7: #{quadruplet_forward.4} parent=0 // loop_footer_branch
    %8 = sbr.rel target = $region3
  $region8: #{quadruplet_forward.4} parent=0 // loop_exit
    _

// kernel: quadruplet_forward.5
$region0: #{quadruplet_forward.5}
  #allocation0 [shape = 'u32[]', space=smem, size = 0x4, offset = 0x4, fixed_abs, tag = 'smem constant byte address 0x4 - core index']
  #allocation1 [shape = 'u32[144,128]{1,0:T(1,128)}', space=vmem, size = 0x12000, scoped, tag = 'internal scratch']
  %s0 = inlined_call_operand.vmem [shape: bf16[128,256], index: 0, kind: input, shape index: {}]
  %s1 = inlined_call_operand.vmem [shape: bf16[256,16], index: 1, kind: input, shape index: {}]
  %s2 = inlined_call_operand.vmem [shape: f32[1,16], index: 2, kind: input, shape index: {}]
  %s3 = inlined_call_operand.vmem [shape: f32[128,16], index: 3, kind: output, shape index: {}]
  %s4 = sld [smem:[#allocation0]]
  $region22: #{quadruplet_forward.5} parent=0
    _
  %s6 = ssub.s32 1, %s4
  %s7 = scalar_select 0, %s6, %s4
  // Predicated region
  $region2: #{quadruplet_forward.5} parent=0 // pred_check
    _
  $region3: #{quadruplet_forward.5} parent=0 // pred_check_branch
    %9 = sbr.rel (0) target = $region5
  $region4: #{quadruplet_forward.5} parent=0 // pred_region
    _
  $region5: #{quadruplet_forward.5} parent=0 // pred_fallthru
    _
  // Predicated region
  $region6: #{quadruplet_forward.5} parent=0 // pred_check
    _
  $region7: #{quadruplet_forward.5} parent=0 // pred_check_branch
    %11 = sbr.rel (0) target = $region9
  $region8: #{quadruplet_forward.5} parent=0 // pred_region
    _
  $region9: #{quadruplet_forward.5} parent=0 // pred_fallthru
    _
  // Predicated region
  $region10: #{quadruplet_forward.5} parent=0 // pred_check
    _
  $region11: #{quadruplet_forward.5} parent=0 // pred_check_branch
    %13 = sbr.rel (0) target = $region13
  $region12: #{quadruplet_forward.5} parent=0 // pred_region
    _
  $region13: #{quadruplet_forward.5} parent=0 // pred_fallthru
    _
  %v15 = vld [vmem:[%s0] sm:$0xff]
  %v16 = vld [vmem:[%s0 + $0x8] sm:$0xff]
  %v17 = vld [vmem:[%s0 + $0x10] sm:$0xff]
  %v18 = vld [vmem:[%s0 + $0x18] sm:$0xff]
  %v19 = vld [vmem:[%s0 + $0x20] sm:$0xff]
  %v20 = vld [vmem:[%s0 + $0x28] sm:$0xff]
  %v21 = vld [vmem:[%s0 + $0x30] sm:$0xff]
  %v22 = vld [vmem:[%s0 + $0x38] sm:$0xff]
  %v23 = vld [vmem:[%s0 + $0x40] sm:$0xff]
  %v24 = vld [vmem:[%s0 + $0x48] sm:$0xff]
  %v25 = vld [vmem:[%s0 + $0x50] sm:$0xff]
  %v26 = vld [vmem:[%s0 + $0x58] sm:$0xff]
  %v27 = vld [vmem:[%s0 + $0x60] sm:$0xff]
  %v28 = vld [vmem:[%s0 + $0x68] sm:$0xff]
  %v29 = vld [vmem:[%s0 + $0x70] sm:$0xff]
  %v30 = vld [vmem:[%s0 + $0x78] sm:$0xff]
  %v31 = vld [vmem:[%s1] sm:$0xf]
  %v32 = vld [vmem:[%s1 + $0x4] sm:$0xf]
  %v33 = vld [vmem:[%s1 + $0x8] sm:$0xf]
  %v34 = vld [vmem:[%s1 + $0xc] sm:$0xf]
  %v35 = vld [vmem:[%s1 + $0x10] sm:$0xf]
  %v36 = vld [vmem:[%s1 + $0x14] sm:$0xf]
  %v37 = vld [vmem:[%s1 + $0x18] sm:$0xf]
  %v38 = vld [vmem:[%s1 + $0x1c] sm:$0xf]
  %v39 = vld [vmem:[%s1 + $0x20] sm:$0xf]
  %v40 = vld [vmem:[%s1 + $0x24] sm:$0xf]
  %v41 = vld [vmem:[%s1 + $0x28] sm:$0xf]
  %v42 = vld [vmem:[%s1 + $0x2c] sm:$0xf]
  %v43 = vld [vmem:[%s1 + $0x30] sm:$0xf]
  %v44 = vld [vmem:[%s1 + $0x34] sm:$0xf]
  %v45 = vld [vmem:[%s1 + $0x38] sm:$0xf]
  %v46 = vld [vmem:[%s1 + $0x3c] sm:$0xf]
  %v47 = vld [vmem:[%s1 + $0x40] sm:$0xf]
  %v48 = vld [vmem:[%s1 + $0x44] sm:$0xf]
  %v49 = vld [vmem:[%s1 + $0x48] sm:$0xf]
  %v50 = vld [vmem:[%s1 + $0x4c] sm:$0xf]
  %v51 = vld [vmem:[%s1 + $0x50] sm:$0xf]
  %v52 = vld [vmem:[%s1 + $0x54] sm:$0xf]
  %v53 = vld [vmem:[%s1 + $0x58] sm:$0xf]
  %v54 = vld [vmem:[%s1 + $0x5c] sm:$0xf]
  %v55 = vld [vmem:[%s1 + $0x60] sm:$0xf]
  %v56 = vld [vmem:[%s1 + $0x64] sm:$0xf]
  %v57 = vld [vmem:[%s1 + $0x68] sm:$0xf]
  %v58 = vld [vmem:[%s1 + $0x6c] sm:$0xf]
  %v59 = vld [vmem:[%s1 + $0x70] sm:$0xf]
  %v60 = vld [vmem:[%s1 + $0x74] sm:$0xf]
  %v61 = vld [vmem:[%s1 + $0x78] sm:$0xf]
  %v62 = vld [vmem:[%s1 + $0x7c] sm:$0xf]
  %v63 = vld [vmem:[%s2] sm:$0x1]
  %v65 = vlaneseq
  %v66 = vshrl.u32 %v65, 7
  %v67 = vsub.s32 0, %v66
  %v68 = vrot.slane %v63, %v67
  %v86 = vunpack.c.l.b16 %v15
  %v87 = vunpack.c.h.b16 %v15
  %v88 = vunpack.c.l.b16 %v16
  %v89 = vunpack.c.h.b16 %v16
  %v90 = vunpack.c.l.b16 %v17
  %v91 = vunpack.c.h.b16 %v17
  %v92 = vunpack.c.l.b16 %v18
  %v93 = vunpack.c.h.b16 %v18
  %v94 = vunpack.c.l.b16 %v19
  %v95 = vunpack.c.h.b16 %v19
  %v96 = vunpack.c.l.b16 %v20
  %v97 = vunpack.c.h.b16 %v20
  %v98 = vunpack.c.l.b16 %v21
  %v99 = vunpack.c.h.b16 %v21
  %v100 = vunpack.c.l.b16 %v22
  %v101 = vunpack.c.h.b16 %v22
  %v102 = vunpack.c.l.b16 %v23
  %v103 = vunpack.c.h.b16 %v23
  %v104 = vunpack.c.l.b16 %v24
  %v105 = vunpack.c.h.b16 %v24
  %v106 = vunpack.c.l.b16 %v25
  %v107 = vunpack.c.h.b16 %v25
  %v108 = vunpack.c.l.b16 %v26
  %v109 = vunpack.c.h.b16 %v26
  %v110 = vunpack.c.l.b16 %v27
  %v111 = vunpack.c.h.b16 %v27
  %v112 = vunpack.c.l.b16 %v28
  %v113 = vunpack.c.h.b16 %v28
  %v114 = vunpack.c.l.b16 %v29
  %v115 = vunpack.c.h.b16 %v29
  %v116 = vunpack.c.l.b16 %v30
  %v117 = vunpack.c.h.b16 %v30
  %v118 = vpack.c.b16 %v88, %v86
  %v119 = vpack.c.b16 %v89, %v87
  %v120 = vpack.c.b16 %v92, %v90
  %v121 = vpack.c.b16 %v93, %v91
  %v122 = vpack.c.b16 %v96, %v94
  %v123 = vpack.c.b16 %v97, %v95
  %v124 = vpack.c.b16 %v100, %v98
  %v125 = vpack.c.b16 %v101, %v99
  %v126 = vpack.c.b16 %v104, %v102
  %v127 = vpack.c.b16 %v105, %v103
  %v128 = vpack.c.b16 %v108, %v106
  %v129 = vpack.c.b16 %v109, %v107
  %v130 = vpack.c.b16 %v112, %v110
  %v131 = vpack.c.b16 %v113, %v111
  %v132 = vpack.c.b16 %v116, %v114
  %v133 = vpack.c.b16 %v117, %v115
  %v182 = vunpack.c.l.b16 %v31
  %v183 = vunpack.c.l.b16 %v32
  %v184 = vunpack.c.l.b16 %v33
  %v185 = vunpack.c.l.b16 %v34
  %v186 = vunpack.c.l.b16 %v35
  %v187 = vunpack.c.l.b16 %v36
  %v188 = vunpack.c.l.b16 %v37
  %v189 = vunpack.c.l.b16 %v38
  %v190 = vunpack.c.l.b16 %v39
  %v191 = vunpack.c.l.b16 %v40
  %v192 = vunpack.c.l.b16 %v41
  %v193 = vunpack.c.l.b16 %v42
  %v194 = vunpack.c.l.b16 %v43
  %v195 = vunpack.c.l.b16 %v44
  %v196 = vunpack.c.l.b16 %v45
  %v197 = vunpack.c.l.b16 %v46
  %v198 = vunpack.c.l.b16 %v47
  %v199 = vunpack.c.l.b16 %v48
  %v200 = vunpack.c.l.b16 %v49
  %v201 = vunpack.c.l.b16 %v50
  %v202 = vunpack.c.l.b16 %v51
  %v203 = vunpack.c.l.b16 %v52
  %v204 = vunpack.c.l.b16 %v53
  %v205 = vunpack.c.l.b16 %v54
  %v206 = vunpack.c.l.b16 %v55
  %v207 = vunpack.c.l.b16 %v56
  %v208 = vunpack.c.l.b16 %v57
  %v209 = vunpack.c.l.b16 %v58
  %v210 = vunpack.c.l.b16 %v59
  %v211 = vunpack.c.l.b16 %v60
  %v212 = vunpack.c.l.b16 %v61
  %v213 = vunpack.c.l.b16 %v62
  %v214 = vpack.c.b16 %v183, %v182
  %v215 = vpack.c.b16 %v185, %v184
  %v216 = vpack.c.b16 %v187, %v186
  %v217 = vpack.c.b16 %v189, %v188
  %v218 = vpack.c.b16 %v191, %v190
  %v219 = vpack.c.b16 %v193, %v192
  %v220 = vpack.c.b16 %v195, %v194
  %v221 = vpack.c.b16 %v197, %v196
  %v222 = vpack.c.b16 %v199, %v198
  %v223 = vpack.c.b16 %v201, %v200
  %v224 = vpack.c.b16 %v203, %v202
  %v225 = vpack.c.b16 %v205, %v204
  %v226 = vpack.c.b16 %v207, %v206
  %v227 = vpack.c.b16 %v209, %v208
  %v228 = vpack.c.b16 %v211, %v210
  %v229 = vpack.c.b16 %v213, %v212
  %246 = vmatprep.subr.bf16.mxu0 0
  %247 = vmatpush1.bf16.msra.mxu0 %v214
  %248 = vmatprep.subr.bf16.mxu0 0
  %249 = vmatpush1.bf16.msra.mxu0 %v215
  %250 = vmatprep.subr.bf16.mxu0 0
  %251 = vmatpush1.bf16.msra.mxu0 %v216
  %252 = vmatprep.subr.bf16.mxu0 0
  %253 = vmatpush1.bf16.msra.mxu0 %v217
  %254 = vmatprep.subr.bf16.mxu0 0
  %255 = vmatpush1.bf16.msra.mxu0 %v218
  %256 = vmatprep.subr.bf16.mxu0 0
  %257 = vmatpush1.bf16.msra.mxu0 %v219
  %258 = vmatprep.subr.bf16.mxu0 0
  %259 = vmatpush1.bf16.msra.mxu0 %v220
  %260 = vmatprep.subr.bf16.mxu0 0
  %261 = vmatpush1.bf16.msra.mxu0 %v221
  %262 = vmatprep.subr.bf16.mxu0 0
  %263 = vmatpush1.bf16.msra.mxu0 %v222
  %264 = vmatprep.subr.bf16.mxu0 0
  %265 = vmatpush1.bf16.msra.mxu0 %v223
  %266 = vmatprep.subr.bf16.mxu0 0
  %267 = vmatpush1.bf16.msra.mxu0 %v224
  %268 = vmatprep.subr.bf16.mxu0 0
  %269 = vmatpush1.bf16.msra.mxu0 %v225
  %270 = vmatprep.subr.bf16.mxu0 0
  %271 = vmatpush1.bf16.msra.mxu0 %v226
  %272 = vmatprep.subr.bf16.mxu0 0
  %273 = vmatpush1.bf16.msra.mxu0 %v227
  %274 = vmatprep.subr.bf16.mxu0 0
  %275 = vmatpush1.bf16.msra.mxu0 %v228
  %276 = vmatprep.subr.bf16.mxu0 0
  %277 = vmatpush1.bf16.msra.mxu0 %v229
  %278 = vmatprep.mubr.bf16.mxu0 %v119
  %279 = vmatmul.mubr.bf16.gmra.mrb[0].mxu0 %v118
  %v280 = vpop.f32.mrb[0].mxu0
  %v281 = vadd.f32 %v68, %v280
  %v282 = vpop.f32.mrb[0].mxu0
  %v283 = vpop.f32.mrb[0].mxu0
  %v284 = vadd.f32 %v68, %v283
  %v285 = vpop.f32.mrb[0].mxu0
  %286 = vmatprep.mubr.bf16.mxu0 %v121
  %287 = vmatmul.mubr.bf16.gmra.mrb[0].mxu0 %v120
  %v288 = vpop.f32.mrb[0].mxu0
  %v289 = vadd.f32 %v68, %v288
  %v290 = vpop.f32.mrb[0].mxu0
  %v291 = vpop.f32.mrb[0].mxu0
  %v292 = vadd.f32 %v68, %v291
  %v293 = vpop.f32.mrb[0].mxu0
  %294 = vmatprep.mubr.bf16.mxu0 %v123
  %295 = vmatmul.mubr.bf16.gmra.mrb[0].mxu0 %v122
  %v296 = vpop.f32.mrb[0].mxu0
  %v297 = vadd.f32 %v68, %v296
  %v298 = vpop.f32.mrb[0].mxu0
  %v299 = vpop.f32.mrb[0].mxu0
  %v300 = vadd.f32 %v68, %v299
  %v301 = vpop.f32.mrb[0].mxu0
  %302 = vmatprep.mubr.bf16.mxu0 %v125
  %303 = vmatmul.mubr.bf16.gmra.mrb[0].mxu0 %v124
  %v304 = vpop.f32.mrb[0].mxu0
  %v305 = vadd.f32 %v68, %v304
  %v306 = vpop.f32.mrb[0].mxu0
  %v307 = vpop.f32.mrb[0].mxu0
  %v308 = vadd.f32 %v68, %v307
  %v309 = vpop.f32.mrb[0].mxu0
  %310 = vmatprep.mubr.bf16.mxu0 %v127
  %311 = vmatmul.mubr.bf16.gmra.mrb[0].mxu0 %v126
  %v312 = vpop.f32.mrb[0].mxu0
  %v313 = vadd.f32 %v68, %v312
  %v314 = vpop.f32.mrb[0].mxu0
  %v315 = vpop.f32.mrb[0].mxu0
  %v316 = vadd.f32 %v68, %v315
  %v317 = vpop.f32.mrb[0].mxu0
  %318 = vmatprep.mubr.bf16.mxu0 %v129
  %319 = vmatmul.mubr.bf16.gmra.mrb[0].mxu0 %v128
  %v320 = vpop.f32.mrb[0].mxu0
  %v321 = vadd.f32 %v68, %v320
  %v322 = vpop.f32.mrb[0].mxu0
  %v323 = vpop.f32.mrb[0].mxu0
  %v324 = vadd.f32 %v68, %v323
  %v325 = vpop.f32.mrb[0].mxu0
  %326 = vmatprep.mubr.bf16.mxu0 %v131
  %327 = vmatmul.mubr.bf16.gmra.mrb[0].mxu0 %v130
  %v328 = vpop.f32.mrb[0].mxu0
  %v329 = vadd.f32 %v68, %v328
  %v330 = vpop.f32.mrb[0].mxu0
  %v331 = vpop.f32.mrb[0].mxu0
  %v332 = vadd.f32 %v68, %v331
  %v333 = vpop.f32.mrb[0].mxu0
  %334 = vmatprep.mubr.bf16.mxu0 %v133
  %335 = vmatmul.mubr.bf16.gmra.mrb[0].mxu0 %v132
  %v336 = vpop.f32.mrb[0].mxu0
  %v337 = vadd.f32 %v68, %v336
  %v338 = vpop.f32.mrb[0].mxu0
  %v339 = vpop.f32.mrb[0].mxu0
  %v340 = vadd.f32 %v68, %v339
  %v341 = vpop.f32.mrb[0].mxu0
  %342 = vdwg.mxu0
  %v343 = vmax.f32 %v281, 0.0
  %v344 = vmax.f32 %v284, 0.0
  %v345 = vmax.f32 %v289, 0.0
  %v346 = vmax.f32 %v292, 0.0
  %v347 = vmax.f32 %v297, 0.0
  %v348 = vmax.f32 %v300, 0.0
  %v349 = vmax.f32 %v305, 0.0
  %v350 = vmax.f32 %v308, 0.0
  %v351 = vmax.f32 %v313, 0.0
  %v352 = vmax.f32 %v316, 0.0
  %v353 = vmax.f32 %v321, 0.0
  %v354 = vmax.f32 %v324, 0.0
  %v355 = vmax.f32 %v329, 0.0
  %v356 = vmax.f32 %v332, 0.0
  %v357 = vmax.f32 %v337, 0.0
  %v358 = vmax.f32 %v340, 0.0
  %vm359 = vcmask 130048
  %360 = vst.msk [vmem:[%s3] sm:$0xff] %vm359, %v343
  %361 = vst.msk [vmem:[%s3 + $0x8] sm:$0xff] %vm359, %v344
  %362 = vst.msk [vmem:[%s3 + $0x10] sm:$0xff] %vm359, %v345
  %363 = vst.msk [vmem:[%s3 + $0x18] sm:$0xff] %vm359, %v346
  %364 = vst.msk [vmem:[%s3 + $0x20] sm:$0xff] %vm359, %v347
  %365 = vst.msk [vmem:[%s3 + $0x28] sm:$0xff] %vm359, %v348
  %366 = vst.msk [vmem:[%s3 + $0x30] sm:$0xff] %vm359, %v349
  %367 = vst.msk [vmem:[%s3 + $0x38] sm:$0xff] %vm359, %v350
  %368 = vst.msk [vmem:[%s3 + $0x40] sm:$0xff] %vm359, %v351
  %369 = vst.msk [vmem:[%s3 + $0x48] sm:$0xff] %vm359, %v352
  %370 = vst.msk [vmem:[%s3 + $0x50] sm:$0xff] %vm359, %v353
  %371 = vst.msk [vmem:[%s3 + $0x58] sm:$0xff] %vm359, %v354
  %372 = vst.msk [vmem:[%s3 + $0x60] sm:$0xff] %vm359, %v355
  %373 = vst.msk [vmem:[%s3 + $0x68] sm:$0xff] %vm359, %v356
  %374 = vst.msk [vmem:[%s3 + $0x70] sm:$0xff] %vm359, %v357
  %375 = vst.msk [vmem:[%s3 + $0x78] sm:$0xff] %vm359, %v358
  // Predicated region
  $region14: #{quadruplet_forward.5} parent=0 // pred_check
    _
  $region15: #{quadruplet_forward.5} parent=0 // pred_check_branch
    %377 = sbr.rel (0) target = $region17
  $region16: #{quadruplet_forward.5} parent=0 // pred_region
    _
  $region17: #{quadruplet_forward.5} parent=0 // pred_fallthru
    _
  // Predicated region
  $region18: #{quadruplet_forward.5} parent=0 // pred_check
    _
  $region19: #{quadruplet_forward.5} parent=0 // pred_check_branch
    %379 = sbr.rel (0) target = $region21
  $region20: #{quadruplet_forward.5} parent=0 // pred_region
    _
  $region21: #{quadruplet_forward.5} parent=0 // pred_fallthru
    _

// kernel: quadruplet_forward.6
$region0: #{quadruplet_forward.6}
  #allocation0 [shape = 'u32[]', space=smem, size = 0x4, offset = 0x4, fixed_abs, tag = 'smem constant byte address 0x4 - core index']
  #allocation1 [shape = 'u32[144,128]{1,0:T(1,128)}', space=vmem, size = 0x12000, scoped, tag = 'internal scratch']
  %s0 = inlined_call_operand.vmem [shape: f32[8,256], index: 0, kind: input, shape index: {}]
  %s1 = inlined_call_operand.vmem [shape: f32[256,32], index: 1, kind: input, shape index: {}]
  %s2 = inlined_call_operand.vmem [shape: f32[1,32], index: 2, kind: input, shape index: {}]
  %s3 = inlined_call_operand.vmem [shape: f32[32,8], index: 3, kind: input, shape index: {}]
  %s4 = inlined_call_operand.vmem [shape: f32[1,8], index: 4, kind: input, shape index: {}]
  %s5 = inlined_call_operand.vmem [shape: f32[32,8], index: 5, kind: input, shape index: {}]
  %s6 = inlined_call_operand.vmem [shape: f32[1,8], index: 6, kind: input, shape index: {}]
  %s7 = inlined_call_operand.vmem [shape: f32[32,32], index: 7, kind: input, shape index: {}]
  %s8 = inlined_call_operand.vmem [shape: f32[1,32], index: 8, kind: input, shape index: {}]
  %s9 = inlined_call_operand.vmem [shape: f32[32,8], index: 9, kind: input, shape index: {}]
  %s10 = inlined_call_operand.vmem [shape: f32[1,8], index: 10, kind: input, shape index: {}]
  %s11 = inlined_call_operand.vmem [shape: f32[8,8], index: 11, kind: input, shape index: {}]
  %s12 = inlined_call_operand.vmem [shape: f32[2,8], index: 12, kind: input, shape index: {}]
  %s13 = inlined_call_operand.vmem [shape: f32[8,32], index: 13, kind: output, shape index: {0}]
  %s14 = inlined_call_operand.vmem [shape: f32[8,8], index: 14, kind: output, shape index: {1}]
  %s15 = inlined_call_operand.vmem [shape: f32[8,8], index: 15, kind: output, shape index: {2}]
  %s16 = inlined_call_operand.vmem [shape: f32[8,32], index: 16, kind: output, shape index: {3}]
  %s17 = inlined_call_operand.vmem [shape: f32[8,8], index: 17, kind: output, shape index: {4}]
  %s18 = inlined_call_operand.hbm [shape: f32[2,8], index: 18, kind: output, shape index: {5}]
  %19 = xla_tuple %s13, %s14, %s15, %s16, %s17, %s18
  %s20 = sld [smem:[#allocation0]]
  $region102: #{quadruplet_forward.6} parent=0
    _
  %s22 = ssub.s32 1, %s20
  %s23 = scalar_select 0, %s22, %s20
  $region1: #{quadruplet_forward.6} parent=0
    #allocation2 [shape = 'u8[1024]{0}', space=vmem, size = 0x400, scoped, tag = 'output window, operand 5, single buffered']
    #allocation3 [shape = 's32[1]{0}', space=sflag, size = 0x4, scoped, tag = 'scoped memory for quadruplet_forward.6']
    %24 = vsyncpa [#allocation3], 0
    // Predicated region
    $region2: #{quadruplet_forward.6} parent=1 // pred_check
      _
    $region3: #{quadruplet_forward.6} parent=1 // pred_check_branch
      %26 = sbr.rel (0) target = $region5
    $region4: #{quadruplet_forward.6} parent=1 // pred_region
      _
    $region5: #{quadruplet_forward.6} parent=1 // pred_fallthru
      _
    // Predicated region
    $region6: #{quadruplet_forward.6} parent=1 // pred_check
      _
    $region7: #{quadruplet_forward.6} parent=1 // pred_check_branch
      %28 = sbr.rel (0) target = $region9
    $region8: #{quadruplet_forward.6} parent=1 // pred_region
      _
    $region9: #{quadruplet_forward.6} parent=1 // pred_fallthru
      _
    // Predicated region
    $region10: #{quadruplet_forward.6} parent=1 // pred_check
      _
    $region11: #{quadruplet_forward.6} parent=1 // pred_check_branch
      %30 = sbr.rel (0) target = $region13
    $region12: #{quadruplet_forward.6} parent=1 // pred_region
      _
    $region13: #{quadruplet_forward.6} parent=1 // pred_fallthru
      _
    // Predicated region
    $region14: #{quadruplet_forward.6} parent=1 // pred_check
      _
    $region15: #{quadruplet_forward.6} parent=1 // pred_check_branch
      %32 = sbr.rel (0) target = $region17
    $region16: #{quadruplet_forward.6} parent=1 // pred_region
      _
    $region17: #{quadruplet_forward.6} parent=1 // pred_fallthru
      _
    // Predicated region
    $region18: #{quadruplet_forward.6} parent=1 // pred_check
      _
    $region19: #{quadruplet_forward.6} parent=1 // pred_check_branch
      %34 = sbr.rel (0) target = $region21
    $region20: #{quadruplet_forward.6} parent=1 // pred_region
      _
    $region21: #{quadruplet_forward.6} parent=1 // pred_fallthru
      _
    // Predicated region
    $region22: #{quadruplet_forward.6} parent=1 // pred_check
      _
    $region23: #{quadruplet_forward.6} parent=1 // pred_check_branch
      %36 = sbr.rel (0) target = $region25
    $region24: #{quadruplet_forward.6} parent=1 // pred_region
      _
    $region25: #{quadruplet_forward.6} parent=1 // pred_fallthru
      _
    // Predicated region
    $region26: #{quadruplet_forward.6} parent=1 // pred_check
      _
    $region27: #{quadruplet_forward.6} parent=1 // pred_check_branch
      %38 = sbr.rel (0) target = $region29
    $region28: #{quadruplet_forward.6} parent=1 // pred_region
      _
    $region29: #{quadruplet_forward.6} parent=1 // pred_fallthru
      _
    // Predicated region
    $region30: #{quadruplet_forward.6} parent=1 // pred_check
      _
    $region31: #{quadruplet_forward.6} parent=1 // pred_check_branch
      %40 = sbr.rel (0) target = $region33
    $region32: #{quadruplet_forward.6} parent=1 // pred_region
      _
    $region33: #{quadruplet_forward.6} parent=1 // pred_fallthru
      _
    // Predicated region
    $region34: #{quadruplet_forward.6} parent=1 // pred_check
      _
    $region35: #{quadruplet_forward.6} parent=1 // pred_check_branch
      %42 = sbr.rel (0) target = $region37
    $region36: #{quadruplet_forward.6} parent=1 // pred_region
      _
    $region37: #{quadruplet_forward.6} parent=1 // pred_fallthru
      _
    // Predicated region
    $region38: #{quadruplet_forward.6} parent=1 // pred_check
      _
    $region39: #{quadruplet_forward.6} parent=1 // pred_check_branch
      %44 = sbr.rel (0) target = $region41
    $region40: #{quadruplet_forward.6} parent=1 // pred_region
      _
    $region41: #{quadruplet_forward.6} parent=1 // pred_fallthru
      _
    // Predicated region
    $region42: #{quadruplet_forward.6} parent=1 // pred_check
      _
    $region43: #{quadruplet_forward.6} parent=1 // pred_check_branch
      %46 = sbr.rel (0) target = $region45
    $region44: #{quadruplet_forward.6} parent=1 // pred_region
      _
    $region45: #{quadruplet_forward.6} parent=1 // pred_fallthru
      _
    // Predicated region
    $region46: #{quadruplet_forward.6} parent=1 // pred_check
      _
    $region47: #{quadruplet_forward.6} parent=1 // pred_check_branch
      %48 = sbr.rel (0) target = $region49
    $region48: #{quadruplet_forward.6} parent=1 // pred_region
      _
    $region49: #{quadruplet_forward.6} parent=1 // pred_fallthru
      _
    // Predicated region
    $region50: #{quadruplet_forward.6} parent=1 // pred_check
      _
    $region51: #{quadruplet_forward.6} parent=1 // pred_check_branch
      %50 = sbr.rel (0) target = $region53
    $region52: #{quadruplet_forward.6} parent=1 // pred_region
      _
    $region53: #{quadruplet_forward.6} parent=1 // pred_fallthru
      _
    %v51 = vld [vmem:[%s0] sm:$0xff]
    %v52 = vld [vmem:[%s0 + $0x8] sm:$0xff]
    %v53 = vld [vmem:[%s1] sm:$0xff]
    %v54 = vld [vmem:[%s1 + $0x8] sm:$0xff]
    %v55 = vld [vmem:[%s1 + $0x10] sm:$0xff]
    %v56 = vld [vmem:[%s1 + $0x18] sm:$0xff]
    %v57 = vld [vmem:[%s1 + $0x20] sm:$0xff]
    %v58 = vld [vmem:[%s1 + $0x28] sm:$0xff]
    %v59 = vld [vmem:[%s1 + $0x30] sm:$0xff]
    %v60 = vld [vmem:[%s1 + $0x38] sm:$0xff]
    %v61 = vld [vmem:[%s1 + $0x40] sm:$0xff]
    %v62 = vld [vmem:[%s1 + $0x48] sm:$0xff]
    %v63 = vld [vmem:[%s1 + $0x50] sm:$0xff]
    %v64 = vld [vmem:[%s1 + $0x58] sm:$0xff]
    %v65 = vld [vmem:[%s1 + $0x60] sm:$0xff]
    %v66 = vld [vmem:[%s1 + $0x68] sm:$0xff]
    %v67 = vld [vmem:[%s1 + $0x70] sm:$0xff]
    %v68 = vld [vmem:[%s1 + $0x78] sm:$0xff]
    %v69 = vld [vmem:[%s1 + $0x80] sm:$0xff]
    %v70 = vld [vmem:[%s1 + $0x88] sm:$0xff]
    %v71 = vld [vmem:[%s1 + $0x90] sm:$0xff]
    %v72 = vld [vmem:[%s1 + $0x98] sm:$0xff]
    %v73 = vld [vmem:[%s1 + $0xa0] sm:$0xff]
    %v74 = vld [vmem:[%s1 + $0xa8] sm:$0xff]
    %v75 = vld [vmem:[%s1 + $0xb0] sm:$0xff]
    %v76 = vld [vmem:[%s1 + $0xb8] sm:$0xff]
    %v77 = vld [vmem:[%s1 + $0xc0] sm:$0xff]
    %v78 = vld [vmem:[%s1 + $0xc8] sm:$0xff]
    %v79 = vld [vmem:[%s1 + $0xd0] sm:$0xff]
    %v80 = vld [vmem:[%s1 + $0xd8] sm:$0xff]
    %v81 = vld [vmem:[%s1 + $0xe0] sm:$0xff]
    %v82 = vld [vmem:[%s1 + $0xe8] sm:$0xff]
    %v83 = vld [vmem:[%s1 + $0xf0] sm:$0xff]
    %v84 = vld [vmem:[%s1 + $0xf8] sm:$0xff]
    %v85 = vld [vmem:[%s2] sm:$0x1]
    %v87 = vlaneseq
    %v88 = vshrl.u32 %v87, 7
    %v89 = vsub.s32 0, %v88
    %v90 = vrot.slane %v85, %v89
    %92 = vmatprep.subr.mxu0 0.0
    %93 = vmatpush1.msra.mxu0 %v53
    %94 = vmatprep.subr.mxu0 0.0
    %95 = vmatpush1.msra.mxu0 %v54
    %96 = vmatprep.subr.mxu0 0.0
    %97 = vmatpush1.msra.mxu0 %v55
    %98 = vmatprep.subr.mxu0 0.0
    %99 = vmatpush1.msra.mxu0 %v56
    %100 = vmatprep.subr.mxu0 0.0
    %101 = vmatpush1.msra.mxu0 %v57
    %102 = vmatprep.subr.mxu0 0.0
    %103 = vmatpush1.msra.mxu0 %v58
    %104 = vmatprep.subr.mxu0 0.0
    %105 = vmatpush1.msra.mxu0 %v59
    %106 = vmatprep.subr.mxu0 0.0
    %107 = vmatpush1.msra.mxu0 %v60
    %108 = vmatprep.subr.mxu0 0.0
    %109 = vmatpush1.msra.mxu0 %v61
    %110 = vmatprep.subr.mxu0 0.0
    %111 = vmatpush1.msra.mxu0 %v62
    %112 = vmatprep.subr.mxu0 0.0
    %113 = vmatpush1.msra.mxu0 %v63
    %114 = vmatprep.subr.mxu0 0.0
    %115 = vmatpush1.msra.mxu0 %v64
    %116 = vmatprep.subr.mxu0 0.0
    %117 = vmatpush1.msra.mxu0 %v65
    %118 = vmatprep.subr.mxu0 0.0
    %119 = vmatpush1.msra.mxu0 %v66
    %120 = vmatprep.subr.mxu0 0.0
    %121 = vmatpush1.msra.mxu0 %v67
    %122 = vmatprep.subr.mxu0 0.0
    %123 = vmatpush1.msra.mxu0 %v68
    %124 = vmatprep.subr.mxu0 0.0
    %125 = vmatpush1.msra.mxu0 %v69
    %126 = vmatprep.subr.mxu0 0.0
    %127 = vmatpush1.msra.mxu0 %v70
    %128 = vmatprep.subr.mxu0 0.0
    %129 = vmatpush1.msra.mxu0 %v71
    %130 = vmatprep.subr.mxu0 0.0
    %131 = vmatpush1.msra.mxu0 %v72
    %132 = vmatprep.subr.mxu0 0.0
    %133 = vmatpush1.msra.mxu0 %v73
    %134 = vmatprep.subr.mxu0 0.0
    %135 = vmatpush1.msra.mxu0 %v74
    %136 = vmatprep.subr.mxu0 0.0
    %137 = vmatpush1.msra.mxu0 %v75
    %138 = vmatprep.subr.mxu0 0.0
    %139 = vmatpush1.msra.mxu0 %v76
    %140 = vmatprep.subr.mxu0 0.0
    %141 = vmatpush1.msra.mxu0 %v77
    %142 = vmatprep.subr.mxu0 0.0
    %143 = vmatpush1.msra.mxu0 %v78
    %144 = vmatprep.subr.mxu0 0.0
    %145 = vmatpush1.msra.mxu0 %v79
    %146 = vmatprep.subr.mxu0 0.0
    %147 = vmatpush1.msra.mxu0 %v80
    %148 = vmatprep.subr.mxu0 0.0
    %149 = vmatpush1.msra.mxu0 %v81
    %150 = vmatprep.subr.mxu0 0.0
    %151 = vmatpush1.msra.mxu0 %v82
    %152 = vmatprep.subr.mxu0 0.0
    %153 = vmatpush1.msra.mxu0 %v83
    %154 = vmatprep.subr.mxu0 0.0
    %155 = vmatpush1.msra.mxu0 %v84
    %156 = vmatprep.mubr.f32.mxu0 %v52
    %157 = vmatmul.mubr.f32.gmra.mrb[0].mxu0 %v51
    %v158 = vpop.f32.mrb[0].mxu0
    %v159 = vadd.f32 %v90, %v158
    %v160 = vpop.f32.mrb[0].mxu0
    %161 = vdwg.mxu0
    %v162 = vmax.f32 %v159, 0.0
    %v163 = vld [vmem:[%s3] sm:$0xff]
    %v164 = vld [vmem:[%s3 + $0x8] sm:$0xff]
    %v165 = vld [vmem:[%s3 + $0x10] sm:$0xff]
    %v166 = vld [vmem:[%s3 + $0x18] sm:$0xff]
    %v167 = vld [vmem:[%s4] sm:$0x1]
    %v169 = vlaneseq
    %v170 = vshrl.u32 %v169, 7
    %v171 = vsub.s32 0, %v170
    %v172 = vrot.slane %v167, %v171
    %vm174 = vcmask 261120
    %v176 = vsel %vm174, %v162, 0
    %178 = vmatprep.subr.mxu0 0.0
    %179 = vmatpush1.msra.mxu0 %v163
    %180 = vmatprep.subr.mxu0 0.0
    %181 = vmatpush1.msra.mxu0 %v164
    %182 = vmatprep.subr.mxu0 0.0
    %183 = vmatpush1.msra.mxu0 %v165
    %184 = vmatprep.subr.mxu0 0.0
    %185 = vmatpush1.msra.mxu0 %v166
    %186 = vmatprep.subr.mxu0 0.0
    %187 = vmatpush1.msra.mxu0 0.0
    %188 = vmatprep.subr.mxu0 0.0
    %189 = vmatpush1.msra.mxu0 0.0
    %190 = vmatprep.subr.mxu0 0.0
    %191 = vmatpush1.msra.mxu0 0.0
    %192 = vmatprep.subr.mxu0 0.0
    %193 = vmatpush1.msra.mxu0 0.0
    %194 = vmatprep.subr.mxu0 0.0
    %195 = vmatpush1.msra.mxu0 0.0
    %196 = vmatprep.subr.mxu0 0.0
    %197 = vmatpush1.msra.mxu0 0.0
    %198 = vmatprep.subr.mxu0 0.0
    %199 = vmatpush1.msra.mxu0 0.0
    %200 = vmatprep.subr.mxu0 0.0
    %201 = vmatpush1.msra.mxu0 0.0
    %202 = vmatprep.subr.mxu0 0.0
    %203 = vmatpush1.msra.mxu0 0.0
    %204 = vmatprep.subr.mxu0 0.0
    %205 = vmatpush1.msra.mxu0 0.0
    %206 = vmatprep.subr.mxu0 0.0
    %207 = vmatpush1.msra.mxu0 0.0
    %208 = vmatprep.subr.mxu0 0.0
    %209 = vmatpush1.msra.mxu0 0.0
    %210 = vmatprep.subr.mxu0 0.0
    %211 = vmatpush1.msra.mxu0 0.0
    %212 = vmatprep.subr.mxu0 0.0
    %213 = vmatpush1.msra.mxu0 0.0
    %214 = vmatprep.subr.mxu0 0.0
    %215 = vmatpush1.msra.mxu0 0.0
    %216 = vmatprep.subr.mxu0 0.0
    %217 = vmatpush1.msra.mxu0 0.0
    %218 = vmatprep.subr.mxu0 0.0
    %219 = vmatpush1.msra.mxu0 0.0
    %220 = vmatprep.subr.mxu0 0.0
    %221 = vmatpush1.msra.mxu0 0.0
    %222 = vmatprep.subr.mxu0 0.0
    %223 = vmatpush1.msra.mxu0 0.0
    %224 = vmatprep.subr.mxu0 0.0
    %225 = vmatpush1.msra.mxu0 0.0
    %226 = vmatprep.subr.mxu0 0.0
    %227 = vmatpush1.msra.mxu0 0.0
    %228 = vmatprep.subr.mxu0 0.0
    %229 = vmatpush1.msra.mxu0 0.0
    %230 = vmatprep.subr.mxu0 0.0
    %231 = vmatpush1.msra.mxu0 0.0
    %232 = vmatprep.subr.mxu0 0.0
    %233 = vmatpush1.msra.mxu0 0.0
    %234 = vmatprep.subr.mxu0 0.0
    %235 = vmatpush1.msra.mxu0 0.0
    %236 = vmatprep.subr.mxu0 0.0
    %237 = vmatpush1.msra.mxu0 0.0
    %238 = vmatprep.subr.mxu0 0.0
    %239 = vmatpush1.msra.mxu0 0.0
    %240 = vmatprep.subr.mxu0 0.0
    %241 = vmatpush1.msra.mxu0 0.0
    %242 = vmatprep.mubr.f32.mxu0 0.0
    %243 = vmatmul.mubr.f32.gmra.mrb[0].mxu0 %v176
    %v244 = vpop.f32.mrb[0].mxu0
    %v245 = vadd.f32 %v172, %v244
    %v246 = vpop.f32.mrb[0].mxu0
    %247 = vdwg.mxu0
    %v248 = vld [vmem:[%s5] sm:$0xff]
    %v249 = vld [vmem:[%s5 + $0x8] sm:$0xff]
    %v250 = vld [vmem:[%s5 + $0x10] sm:$0xff]
    %v251 = vld [vmem:[%s5 + $0x18] sm:$0xff]
    %v252 = vld [vmem:[%s6] sm:$0x1]
    %v254 = vlaneseq
    %v255 = vshrl.u32 %v254, 7
    %v256 = vsub.s32 0, %v255
    %v257 = vrot.slane %v252, %v256
    %259 = vmatprep.subr.mxu0 0.0
    %260 = vmatpush1.msra.mxu0 %v248
    %261 = vmatprep.subr.mxu0 0.0
    %262 = vmatpush1.msra.mxu0 %v249
    %263 = vmatprep.subr.mxu0 0.0
    %264 = vmatpush1.msra.mxu0 %v250
    %265 = vmatprep.subr.mxu0 0.0
    %266 = vmatpush1.msra.mxu0 %v251
    %267 = vmatprep.subr.mxu0 0.0
    %268 = vmatpush1.msra.mxu0 0.0
    %269 = vmatprep.subr.mxu0 0.0
    %270 = vmatpush1.msra.mxu0 0.0
    %271 = vmatprep.subr.mxu0 0.0
    %272 = vmatpush1.msra.mxu0 0.0
    %273 = vmatprep.subr.mxu0 0.0
    %274 = vmatpush1.msra.mxu0 0.0
    %275 = vmatprep.subr.mxu0 0.0
    %276 = vmatpush1.msra.mxu0 0.0
    %277 = vmatprep.subr.mxu0 0.0
    %278 = vmatpush1.msra.mxu0 0.0
    %279 = vmatprep.subr.mxu0 0.0
    %280 = vmatpush1.msra.mxu0 0.0
    %281 = vmatprep.subr.mxu0 0.0
    %282 = vmatpush1.msra.mxu0 0.0
    %283 = vmatprep.subr.mxu0 0.0
    %284 = vmatpush1.msra.mxu0 0.0
    %285 = vmatprep.subr.mxu0 0.0
    %286 = vmatpush1.msra.mxu0 0.0
    %287 = vmatprep.subr.mxu0 0.0
    %288 = vmatpush1.msra.mxu0 0.0
    %289 = vmatprep.subr.mxu0 0.0
    %290 = vmatpush1.msra.mxu0 0.0
    %291 = vmatprep.subr.mxu0 0.0
    %292 = vmatpush1.msra.mxu0 0.0
    %293 = vmatprep.subr.mxu0 0.0
    %294 = vmatpush1.msra.mxu0 0.0
    %295 = vmatprep.subr.mxu0 0.0
    %296 = vmatpush1.msra.mxu0 0.0
    %297 = vmatprep.subr.mxu0 0.0
    %298 = vmatpush1.msra.mxu0 0.0
    %299 = vmatprep.subr.mxu0 0.0
    %300 = vmatpush1.msra.mxu0 0.0
    %301 = vmatprep.subr.mxu0 0.0
    %302 = vmatpush1.msra.mxu0 0.0
    %303 = vmatprep.subr.mxu0 0.0
    %304 = vmatpush1.msra.mxu0 0.0
    %305 = vmatprep.subr.mxu0 0.0
    %306 = vmatpush1.msra.mxu0 0.0
    %307 = vmatprep.subr.mxu0 0.0
    %308 = vmatpush1.msra.mxu0 0.0
    %309 = vmatprep.subr.mxu0 0.0
    %310 = vmatpush1.msra.mxu0 0.0
    %311 = vmatprep.subr.mxu0 0.0
    %312 = vmatpush1.msra.mxu0 0.0
    %313 = vmatprep.subr.mxu0 0.0
    %314 = vmatpush1.msra.mxu0 0.0
    %315 = vmatprep.subr.mxu0 0.0
    %316 = vmatpush1.msra.mxu0 0.0
    %317 = vmatprep.subr.mxu0 0.0
    %318 = vmatpush1.msra.mxu0 0.0
    %319 = vmatprep.subr.mxu0 0.0
    %320 = vmatpush1.msra.mxu0 0.0
    %321 = vmatprep.subr.mxu0 0.0
    %322 = vmatpush1.msra.mxu0 0.0
    %323 = vmatprep.mubr.f32.mxu0 0.0
    %324 = vmatmul.mubr.f32.gmra.mrb[0].mxu0 %v176
    %v325 = vpop.f32.mrb[0].mxu0
    %v326 = vadd.f32 %v257, %v325
    %v327 = vpop.f32.mrb[0].mxu0
    %328 = vdwg.mxu0
    %v329 = vld [vmem:[%s7] sm:$0xff]
    %v330 = vld [vmem:[%s7 + $0x8] sm:$0xff]
    %v331 = vld [vmem:[%s7 + $0x10] sm:$0xff]
    %v332 = vld [vmem:[%s7 + $0x18] sm:$0xff]
    %v333 = vld [vmem:[%s8] sm:$0x1]
    %v335 = vlaneseq
    %v336 = vshrl.u32 %v335, 7
    %v337 = vsub.s32 0, %v336
    %v338 = vrot.slane %v333, %v337
    %340 = vmatprep.subr.mxu0 0.0
    %341 = vmatpush1.msra.mxu0 %v329
    %342 = vmatprep.subr.mxu0 0.0
    %343 = vmatpush1.msra.mxu0 %v330
    %344 = vmatprep.subr.mxu0 0.0
    %345 = vmatpush1.msra.mxu0 %v331
    %346 = vmatprep.subr.mxu0 0.0
    %347 = vmatpush1.msra.mxu0 %v332
    %348 = vmatprep.subr.mxu0 0.0
    %349 = vmatpush1.msra.mxu0 0.0
    %350 = vmatprep.subr.mxu0 0.0
    %351 = vmatpush1.msra.mxu0 0.0
    %352 = vmatprep.subr.mxu0 0.0
    %353 = vmatpush1.msra.mxu0 0.0
    %354 = vmatprep.subr.mxu0 0.0
    %355 = vmatpush1.msra.mxu0 0.0
    %356 = vmatprep.subr.mxu0 0.0
    %357 = vmatpush1.msra.mxu0 0.0
    %358 = vmatprep.subr.mxu0 0.0
    %359 = vmatpush1.msra.mxu0 0.0
    %360 = vmatprep.subr.mxu0 0.0
    %361 = vmatpush1.msra.mxu0 0.0
    %362 = vmatprep.subr.mxu0 0.0
    %363 = vmatpush1.msra.mxu0 0.0
    %364 = vmatprep.subr.mxu0 0.0
    %365 = vmatpush1.msra.mxu0 0.0
    %366 = vmatprep.subr.mxu0 0.0
    %367 = vmatpush1.msra.mxu0 0.0
    %368 = vmatprep.subr.mxu0 0.0
    %369 = vmatpush1.msra.mxu0 0.0
    %370 = vmatprep.subr.mxu0 0.0
    %371 = vmatpush1.msra.mxu0 0.0
    %372 = vmatprep.subr.mxu0 0.0
    %373 = vmatpush1.msra.mxu0 0.0
    %374 = vmatprep.subr.mxu0 0.0
    %375 = vmatpush1.msra.mxu0 0.0
    %376 = vmatprep.subr.mxu0 0.0
    %377 = vmatpush1.msra.mxu0 0.0
    %378 = vmatprep.subr.mxu0 0.0
    %379 = vmatpush1.msra.mxu0 0.0
    %380 = vmatprep.subr.mxu0 0.0
    %381 = vmatpush1.msra.mxu0 0.0
    %382 = vmatprep.subr.mxu0 0.0
    %383 = vmatpush1.msra.mxu0 0.0
    %384 = vmatprep.subr.mxu0 0.0
    %385 = vmatpush1.msra.mxu0 0.0
    %386 = vmatprep.subr.mxu0 0.0
    %387 = vmatpush1.msra.mxu0 0.0
    %388 = vmatprep.subr.mxu0 0.0
    %389 = vmatpush1.msra.mxu0 0.0
    %390 = vmatprep.subr.mxu0 0.0
    %391 = vmatpush1.msra.mxu0 0.0
    %392 = vmatprep.subr.mxu0 0.0
    %393 = vmatpush1.msra.mxu0 0.0
    %394 = vmatprep.subr.mxu0 0.0
    %395 = vmatpush1.msra.mxu0 0.0
    %396 = vmatprep.subr.mxu0 0.0
    %397 = vmatpush1.msra.mxu0 0.0
    %398 = vmatprep.subr.mxu0 0.0
    %399 = vmatpush1.msra.mxu0 0.0
    %400 = vmatprep.subr.mxu0 0.0
    %401 = vmatpush1.msra.mxu0 0.0
    %402 = vmatprep.subr.mxu0 0.0
    %403 = vmatpush1.msra.mxu0 0.0
    %404 = vmatprep.mubr.f32.mxu0 0.0
    %405 = vmatmul.mubr.f32.gmra.mrb[0].mxu0 %v176
    %v406 = vpop.f32.mrb[0].mxu0
    %v407 = vadd.f32 %v338, %v406
    %v408 = vpop.f32.mrb[0].mxu0
    %409 = vdwg.mxu0
    %v410 = vmul.f32 %v326, 0.5
    %v411 = vmul.f32 %v410, 1.442695
    %v412 = vpow.pop %v411
    %v413 = vld [vmem:[%s11] sm:$0xff]
    %v414 = vmul.f32 %v412, %v413
    %v415 = vadd.f32 %v245, %v414
    %v416 = vld [vmem:[%s12] sm:$0x3]
    %vm417 = vcmask 64512
    %v419 = vsel %vm417, %v416, 0
    %421 = vmatprep.subr.mxu0 0.0
    %422 = vmatpush1.msra.mxu0 %v407
    %423 = vmatprep.subr.mxu0 0.0
    %424 = vmatpush1.msra.mxu0 0.0
    %425 = vmatprep.subr.mxu0 0.0
    %426 = vmatpush1.msra.mxu0 0.0
    %427 = vmatprep.subr.mxu0 0.0
    %428 = vmatpush1.msra.mxu0 0.0
    %429 = vmatprep.subr.mxu0 0.0
    %430 = vmatpush1.msra.mxu0 0.0
    %431 = vmatprep.subr.mxu0 0.0
    %432 = vmatpush1.msra.mxu0 0.0
    %433 = vmatprep.subr.mxu0 0.0
    %434 = vmatpush1.msra.mxu0 0.0
    %435 = vmatprep.subr.mxu0 0.0
    %436 = vmatpush1.msra.mxu0 0.0
    %437 = vmatprep.subr.mxu0 0.0
    %438 = vmatpush1.msra.mxu0 0.0
    %439 = vmatprep.subr.mxu0 0.0
    %440 = vmatpush1.msra.mxu0 0.0
    %441 = vmatprep.subr.mxu0 0.0
    %442 = vmatpush1.msra.mxu0 0.0
    %443 = vmatprep.subr.mxu0 0.0
    %444 = vmatpush1.msra.mxu0 0.0
    %445 = vmatprep.subr.mxu0 0.0
    %446 = vmatpush1.msra.mxu0 0.0
    %447 = vmatprep.subr.mxu0 0.0
    %448 = vmatpush1.msra.mxu0 0.0
    %449 = vmatprep.subr.mxu0 0.0
    %450 = vmatpush1.msra.mxu0 0.0
    %451 = vmatprep.subr.mxu0 0.0
    %452 = vmatpush1.msra.mxu0 0.0
    %453 = vmatprep.subr.mxu0 0.0
    %454 = vmatpush1.msra.mxu0 0.0
    %455 = vmatprep.subr.mxu0 0.0
    %456 = vmatpush1.msra.mxu0 0.0
    %457 = vmatprep.subr.mxu0 0.0
    %458 = vmatpush1.msra.mxu0 0.0
    %459 = vmatprep.subr.mxu0 0.0
    %460 = vmatpush1.msra.mxu0 0.0
    %461 = vmatprep.subr.mxu0 0.0
    %462 = vmatpush1.msra.mxu0 0.0
    %463 = vmatprep.subr.mxu0 0.0
    %464 = vmatpush1.msra.mxu0 0.0
    %465 = vmatprep.subr.mxu0 0.0
    %466 = vmatpush1.msra.mxu0 0.0
    %467 = vmatprep.subr.mxu0 0.0
    %468 = vmatpush1.msra.mxu0 0.0
    %469 = vmatprep.subr.mxu0 0.0
    %470 = vmatpush1.msra.mxu0 0.0
    %471 = vmatprep.subr.mxu0 0.0
    %472 = vmatpush1.msra.mxu0 0.0
    %473 = vmatprep.subr.mxu0 0.0
    %474 = vmatpush1.msra.mxu0 0.0
    %475 = vmatprep.subr.mxu0 0.0
    %476 = vmatpush1.msra.mxu0 0.0
    %477 = vmatprep.subr.mxu0 0.0
    %478 = vmatpush1.msra.mxu0 0.0
    %479 = vmatprep.subr.mxu0 0.0
    %480 = vmatpush1.msra.mxu0 0.0
    %481 = vmatprep.subr.mxu0 0.0
    %482 = vmatpush1.msra.mxu0 0.0
    %483 = vmatprep.subr.mxu0 0.0
    %484 = vmatpush1.msra.mxu0 0.0
    %485 = vmatprep.mubr.f32.mxu0 0.0
    %486 = vmatmul.mubr.f32.gmra.mrb[0].mxu0 %v419
    %v487 = vpop.f32.mrb[0].mxu0
    %v488 = vadd.f32 0.0, %v487
    %v489 = vpop.f32.mrb[0].mxu0
    %490 = vdwg.mxu0
    %v491 = vld [vmem:[%s9] sm:$0xff]
    %v492 = vld [vmem:[%s9 + $0x8] sm:$0xff]
    %v493 = vld [vmem:[%s9 + $0x10] sm:$0xff]
    %v494 = vld [vmem:[%s9 + $0x18] sm:$0xff]
    %v495 = vld [vmem:[%s10] sm:$0x1]
    %v497 = vlaneseq
    %v498 = vshrl.u32 %v497, 7
    %v499 = vsub.s32 0, %v498
    %v500 = vrot.slane %v495, %v499
    %v503 = vsel %vm174, %v488, 0
    %505 = vmatprep.subr.mxu0 0.0
    %506 = vmatpush1.msra.mxu0 %v491
    %507 = vmatprep.subr.mxu0 0.0
    %508 = vmatpush1.msra.mxu0 %v492
    %509 = vmatprep.subr.mxu0 0.0
    %510 = vmatpush1.msra.mxu0 %v493
    %511 = vmatprep.subr.mxu0 0.0
    %512 = vmatpush1.msra.mxu0 %v494
    %513 = vmatprep.subr.mxu0 0.0
    %514 = vmatpush1.msra.mxu0 0.0
    %515 = vmatprep.subr.mxu0 0.0
    %516 = vmatpush1.msra.mxu0 0.0
    %517 = vmatprep.subr.mxu0 0.0
    %518 = vmatpush1.msra.mxu0 0.0
    %519 = vmatprep.subr.mxu0 0.0
    %520 = vmatpush1.msra.mxu0 0.0
    %521 = vmatprep.subr.mxu0 0.0
    %522 = vmatpush1.msra.mxu0 0.0
    %523 = vmatprep.subr.mxu0 0.0
    %524 = vmatpush1.msra.mxu0 0.0
    %525 = vmatprep.subr.mxu0 0.0
    %526 = vmatpush1.msra.mxu0 0.0
    %527 = vmatprep.subr.mxu0 0.0
    %528 = vmatpush1.msra.mxu0 0.0
    %529 = vmatprep.subr.mxu0 0.0
    %530 = vmatpush1.msra.mxu0 0.0
    %531 = vmatprep.subr.mxu0 0.0
    %532 = vmatpush1.msra.mxu0 0.0
    %533 = vmatprep.subr.mxu0 0.0
    %534 = vmatpush1.msra.mxu0 0.0
    %535 = vmatprep.subr.mxu0 0.0
    %536 = vmatpush1.msra.mxu0 0.0
    %537 = vmatprep.subr.mxu0 0.0
    %538 = vmatpush1.msra.mxu0 0.0
    %539 = vmatprep.subr.mxu0 0.0
    %540 = vmatpush1.msra.mxu0 0.0
    %541 = vmatprep.subr.mxu0 0.0
    %542 = vmatpush1.msra.mxu0 0.0
    %543 = vmatprep.subr.mxu0 0.0
    %544 = vmatpush1.msra.mxu0 0.0
    %545 = vmatprep.subr.mxu0 0.0
    %546 = vmatpush1.msra.mxu0 0.0
    %547 = vmatprep.subr.mxu0 0.0
    %548 = vmatpush1.msra.mxu0 0.0
    %549 = vmatprep.subr.mxu0 0.0
    %550 = vmatpush1.msra.mxu0 0.0
    %551 = vmatprep.subr.mxu0 0.0
    %552 = vmatpush1.msra.mxu0 0.0
    %553 = vmatprep.subr.mxu0 0.0
    %554 = vmatpush1.msra.mxu0 0.0
    %555 = vmatprep.subr.mxu0 0.0
    %556 = vmatpush1.msra.mxu0 0.0
    %557 = vmatprep.subr.mxu0 0.0
    %558 = vmatpush1.msra.mxu0 0.0
    %559 = vmatprep.subr.mxu0 0.0
    %560 = vmatpush1.msra.mxu0 0.0
    %561 = vmatprep.subr.mxu0 0.0
    %562 = vmatpush1.msra.mxu0 0.0
    %563 = vmatprep.subr.mxu0 0.0
    %564 = vmatpush1.msra.mxu0 0.0
    %565 = vmatprep.subr.mxu0 0.0
    %566 = vmatpush1.msra.mxu0 0.0
    %567 = vmatprep.subr.mxu0 0.0
    %568 = vmatpush1.msra.mxu0 0.0
    %569 = vmatprep.mubr.f32.mxu0 0.0
    %570 = vmatmul.mubr.f32.gmra.mrb[0].mxu0 %v503
    %v571 = vpop.f32.mrb[0].mxu0
    %v572 = vadd.f32 %v500, %v571
    %v573 = vpop.f32.mrb[0].mxu0
    %574 = vdwg.mxu0
    %vm575 = vcmask 58368
    %v576 = vsel %vm575, %v572, -inf
    %577 = vmax.xlane.f32.xlu0 %v576
    %v578 = vpop.xlane.xlu0 %577
    %v579 = vsub.f32 %v572, %v578
    %v580 = vmul.f32 %v579, 1.442695
    %v581 = vpow.pop %v580
    %v582 = vsel %vm575, %v581, 0.0
    %583 = vadd.xlane.f32.xlu0 %v582
    %v584 = vpop.xlane.xlu0 %583
    %v585 = vrcp.pop %v584
    %v586 = vmul.f32 %v581, %v585
    %587 = vst.msk [vmem:[%s13] sm:$0xff] %vm174, %v162
    %588 = vst.msk [vmem:[%s14] sm:$0xff] %vm417, %v245
    %589 = vst.msk [vmem:[%s15] sm:$0xff] %vm417, %v326
    %590 = vst.msk [vmem:[%s16] sm:$0xff] %vm174, %v407
    %591 = vst.msk [vmem:[%s17] sm:$0xff] %vm417, %v415
    %592 = vst.msk [vmem:[#allocation2] sm:$0x3] %vm575, %v586
    // Predicated region
    $region54: #{quadruplet_forward.6} parent=1 // pred_check
      _
    $region55: #{quadruplet_forward.6} parent=1 // pred_check_branch
      %594 = sbr.rel (0) target = $region57
    $region56: #{quadruplet_forward.6} parent=1 // pred_region
      _
    $region57: #{quadruplet_forward.6} parent=1 // pred_fallthru
      _
    // Predicated region
    $region58: #{quadruplet_forward.6} parent=1 // pred_check
      _
    $region59: #{quadruplet_forward.6} parent=1 // pred_check_branch
      %596 = sbr.rel (0) target = $region61
    $region60: #{quadruplet_forward.6} parent=1 // pred_region
      _
    $region61: #{quadruplet_forward.6} parent=1 // pred_fallthru
      _
    // Predicated region
    $region62: #{quadruplet_forward.6} parent=1 // pred_check
      _
    $region63: #{quadruplet_forward.6} parent=1 // pred_check_branch
      %598 = sbr.rel (0) target = $region65
    $region64: #{quadruplet_forward.6} parent=1 // pred_region
      _
    $region65: #{quadruplet_forward.6} parent=1 // pred_fallthru
      _
    // Predicated region
    $region66: #{quadruplet_forward.6} parent=1 // pred_check
      _
    $region67: #{quadruplet_forward.6} parent=1 // pred_check_branch
      %600 = sbr.rel (0) target = $region69
    $region68: #{quadruplet_forward.6} parent=1 // pred_region
      _
    $region69: #{quadruplet_forward.6} parent=1 // pred_fallthru
      _
    // Predicated region
    $region70: #{quadruplet_forward.6} parent=1 // pred_check
      _
    $region71: #{quadruplet_forward.6} parent=1 // pred_check_branch
      %602 = sbr.rel (0) target = $region73
    $region72: #{quadruplet_forward.6} parent=1 // pred_region
      _
    $region73: #{quadruplet_forward.6} parent=1 // pred_fallthru
      _
    // Predicated region
    $region74: #{quadruplet_forward.6} parent=1 // pred_check
      _
    $region75: #{quadruplet_forward.6} parent=1 // pred_check_branch
      %604 = sbr.rel (0) target = $region77
    $region76: #{quadruplet_forward.6} parent=1 // pred_region
      %s606 = ssub.s32 32, 32
      %607 = vsyncadd [#allocation3], %s606
      %s609 = sshll.u32 [#allocation2], 4
      %s610 = int_to_ptr.vmem [resolvable:$true] %s609
      %612 = dma.vmem_to_hbm [thread:$0]  %s610, 32, %s18, [#allocation3]
    $region77: #{quadruplet_forward.6} parent=1 // pred_fallthru
      _
    // Predicated region
    $region78: #{quadruplet_forward.6} parent=1 // pred_check
      _
    $region79: #{quadruplet_forward.6} parent=1 // pred_check_branch
      %614 = sbr.rel (0) target = $region81
    $region80: #{quadruplet_forward.6} parent=1 // pred_region
      _
    $region81: #{quadruplet_forward.6} parent=1 // pred_fallthru
      _
    // Predicated region
    $region82: #{quadruplet_forward.6} parent=1 // pred_check
      _
    $region83: #{quadruplet_forward.6} parent=1 // pred_check_branch
      %616 = sbr.rel (0) target = $region85
    $region84: #{quadruplet_forward.6} parent=1 // pred_region
      _
    $region85: #{quadruplet_forward.6} parent=1 // pred_fallthru
      _
    // Predicated region
    $region86: #{quadruplet_forward.6} parent=1 // pred_check
      _
    $region87: #{quadruplet_forward.6} parent=1 // pred_check_branch
      %618 = sbr.rel (0) target = $region89
    $region88: #{quadruplet_forward.6} parent=1 // pred_region
      _
    $region89: #{quadruplet_forward.6} parent=1 // pred_fallthru
      _
    // Predicated region
    $region90: #{quadruplet_forward.6} parent=1 // pred_check
      _
    $region91: #{quadruplet_forward.6} parent=1 // pred_check_branch
      %620 = sbr.rel (0) target = $region93
    $region92: #{quadruplet_forward.6} parent=1 // pred_region
      _
    $region93: #{quadruplet_forward.6} parent=1 // pred_fallthru
      _
    // Predicated region
    $region94: #{quadruplet_forward.6} parent=1 // pred_check
      _
    $region95: #{quadruplet_forward.6} parent=1 // pred_check_branch
      %622 = sbr.rel (0) target = $region97
    $region96: #{quadruplet_forward.6} parent=1 // pred_region
      _
    $region97: #{quadruplet_forward.6} parent=1 // pred_fallthru
      _
    // Predicated region
    $region98: #{quadruplet_forward.6} parent=1 // pred_check
      _
    $region99: #{quadruplet_forward.6} parent=1 // pred_check_branch
      %624 = sbr.rel (0) target = $region101
    $region100: #{quadruplet_forward.6} parent=1 // pred_region
      %625 = dma.done [#allocation3], 32
    $region101: #{quadruplet_forward.6} parent=1 // pred_fallthru
      _
    %626 = vsyncpa [#allocation3], 1

// kernel: quadruplet_forward.7
$region0: #{quadruplet_forward.7}
  #allocation0 [shape = 'u32[]', space=smem, size = 0x4, offset = 0x4, fixed_abs, tag = 'smem constant byte address 0x4 - core index']
  #allocation1 [shape = 'u32[144,128]{1,0:T(1,128)}', space=vmem, size = 0x12000, scoped, tag = 'internal scratch']
  %s0 = inlined_call_operand.vmem [shape: f32[8,8], index: 0, kind: input, shape index: {}]
  %s1 = inlined_call_operand.vmem [shape: f32[8,32], index: 1, kind: input, shape index: {}]
  %s2 = inlined_call_operand.vmem [shape: f32[1,32], index: 2, kind: input, shape index: {}]
  %s3 = inlined_call_operand.vmem [shape: f32[32,256], index: 3, kind: input, shape index: {}]
  %s4 = inlined_call_operand.vmem [shape: f32[1,256], index: 4, kind: input, shape index: {}]
  %s5 = inlined_call_operand.vmem [shape: f32[256,1024], index: 5, kind: input, shape index: {}]
  %s6 = inlined_call_operand.vmem [shape: f32[1,1024], index: 6, kind: input, shape index: {}]
  %s7 = inlined_call_operand.vmem [shape: f32[8,1024], index: 7, kind: output, shape index: {}]
  %s8 = sld [smem:[#allocation0]]
  $region38: #{quadruplet_forward.7} parent=0
    _
  %s10 = ssub.s32 1, %s8
  %s11 = scalar_select 0, %s10, %s8
  // Predicated region
  $region2: #{quadruplet_forward.7} parent=0 // pred_check
    _
  $region3: #{quadruplet_forward.7} parent=0 // pred_check_branch
    %13 = sbr.rel (0) target = $region5
  $region4: #{quadruplet_forward.7} parent=0 // pred_region
    _
  $region5: #{quadruplet_forward.7} parent=0 // pred_fallthru
    _
  // Predicated region
  $region6: #{quadruplet_forward.7} parent=0 // pred_check
    _
  $region7: #{quadruplet_forward.7} parent=0 // pred_check_branch
    %15 = sbr.rel (0) target = $region9
  $region8: #{quadruplet_forward.7} parent=0 // pred_region
    _
  $region9: #{quadruplet_forward.7} parent=0 // pred_fallthru
    _
  // Predicated region
  $region10: #{quadruplet_forward.7} parent=0 // pred_check
    _
  $region11: #{quadruplet_forward.7} parent=0 // pred_check_branch
    %17 = sbr.rel (0) target = $region13
  $region12: #{quadruplet_forward.7} parent=0 // pred_region
    _
  $region13: #{quadruplet_forward.7} parent=0 // pred_fallthru
    _
  // Predicated region
  $region14: #{quadruplet_forward.7} parent=0 // pred_check
    _
  $region15: #{quadruplet_forward.7} parent=0 // pred_check_branch
    %19 = sbr.rel (0) target = $region17
  $region16: #{quadruplet_forward.7} parent=0 // pred_region
    _
  $region17: #{quadruplet_forward.7} parent=0 // pred_fallthru
    _
  // Predicated region
  $region18: #{quadruplet_forward.7} parent=0 // pred_check
    _
  $region19: #{quadruplet_forward.7} parent=0 // pred_check_branch
    %21 = sbr.rel (0) target = $region21
  $region20: #{quadruplet_forward.7} parent=0 // pred_region
    _
  $region21: #{quadruplet_forward.7} parent=0 // pred_fallthru
    _
  // Predicated region
  $region22: #{quadruplet_forward.7} parent=0 // pred_check
    _
  $region23: #{quadruplet_forward.7} parent=0 // pred_check_branch
    %23 = sbr.rel (0) target = $region25
  $region24: #{quadruplet_forward.7} parent=0 // pred_region
    _
  $region25: #{quadruplet_forward.7} parent=0 // pred_fallthru
    _
  // Predicated region
  $region26: #{quadruplet_forward.7} parent=0 // pred_check
    _
  $region27: #{quadruplet_forward.7} parent=0 // pred_check_branch
    %25 = sbr.rel (0) target = $region29
  $region28: #{quadruplet_forward.7} parent=0 // pred_region
    _
  $region29: #{quadruplet_forward.7} parent=0 // pred_fallthru
    _
  %v26 = vld [vmem:[%s0] sm:$0xff]
  %v27 = vld [vmem:[%s1] sm:$0xff]
  %v28 = vld [vmem:[%s2] sm:$0x1]
  %v30 = vlaneseq
  %v31 = vshrl.u32 %v30, 7
  %v32 = vsub.s32 0, %v31
  %v33 = vrot.slane %v28, %v32
  %vm35 = vcmask 64512
  %v37 = vsel %vm35, %v26, 0
  %39 = vmatprep.subr.mxu0 0.0
  %40 = vmatpush1.msra.mxu0 %v27
  %41 = vmatprep.subr.mxu0 0.0
  %42 = vmatpush1.msra.mxu0 0.0
  %43 = vmatprep.subr.mxu0 0.0
  %44 = vmatpush1.msra.mxu0 0.0
  %45 = vmatprep.subr.mxu0 0.0
  %46 = vmatpush1.msra.mxu0 0.0
  %47 = vmatprep.subr.mxu0 0.0
  %48 = vmatpush1.msra.mxu0 0.0
  %49 = vmatprep.subr.mxu0 0.0
  %50 = vmatpush1.msra.mxu0 0.0
  %51 = vmatprep.subr.mxu0 0.0
  %52 = vmatpush1.msra.mxu0 0.0
  %53 = vmatprep.subr.mxu0 0.0
  %54 = vmatpush1.msra.mxu0 0.0
  %55 = vmatprep.subr.mxu0 0.0
  %56 = vmatpush1.msra.mxu0 0.0
  %57 = vmatprep.subr.mxu0 0.0
  %58 = vmatpush1.msra.mxu0 0.0
  %59 = vmatprep.subr.mxu0 0.0
  %60 = vmatpush1.msra.mxu0 0.0
  %61 = vmatprep.subr.mxu0 0.0
  %62 = vmatpush1.msra.mxu0 0.0
  %63 = vmatprep.subr.mxu0 0.0
  %64 = vmatpush1.msra.mxu0 0.0
  %65 = vmatprep.subr.mxu0 0.0
  %66 = vmatpush1.msra.mxu0 0.0
  %67 = vmatprep.subr.mxu0 0.0
  %68 = vmatpush1.msra.mxu0 0.0
  %69 = vmatprep.subr.mxu0 0.0
  %70 = vmatpush1.msra.mxu0 0.0
  %71 = vmatprep.subr.mxu0 0.0
  %72 = vmatpush1.msra.mxu0 0.0
  %73 = vmatprep.subr.mxu0 0.0
  %74 = vmatpush1.msra.mxu0 0.0
  %75 = vmatprep.subr.mxu0 0.0
  %76 = vmatpush1.msra.mxu0 0.0
  %77 = vmatprep.subr.mxu0 0.0
  %78 = vmatpush1.msra.mxu0 0.0
  %79 = vmatprep.subr.mxu0 0.0
  %80 = vmatpush1.msra.mxu0 0.0
  %81 = vmatprep.subr.mxu0 0.0
  %82 = vmatpush1.msra.mxu0 0.0
  %83 = vmatprep.subr.mxu0 0.0
  %84 = vmatpush1.msra.mxu0 0.0
  %85 = vmatprep.subr.mxu0 0.0
  %86 = vmatpush1.msra.mxu0 0.0
  %87 = vmatprep.subr.mxu0 0.0
  %88 = vmatpush1.msra.mxu0 0.0
  %89 = vmatprep.subr.mxu0 0.0
  %90 = vmatpush1.msra.mxu0 0.0
  %91 = vmatprep.subr.mxu0 0.0
  %92 = vmatpush1.msra.mxu0 0.0
  %93 = vmatprep.subr.mxu0 0.0
  %94 = vmatpush1.msra.mxu0 0.0
  %95 = vmatprep.subr.mxu0 0.0
  %96 = vmatpush1.msra.mxu0 0.0
  %97 = vmatprep.subr.mxu0 0.0
  %98 = vmatpush1.msra.mxu0 0.0
  %99 = vmatprep.subr.mxu0 0.0
  %100 = vmatpush1.msra.mxu0 0.0
  %101 = vmatprep.subr.mxu0 0.0
  %102 = vmatpush1.msra.mxu0 0.0
  %103 = vmatprep.mubr.f32.mxu0 0.0
  %104 = vmatmul.mubr.f32.gmra.mrb[0].mxu0 %v37
  %v105 = vpop.f32.mrb[0].mxu0
  %v106 = vadd.f32 %v33, %v105
  %v107 = vpop.f32.mrb[0].mxu0
  %108 = vdwg.mxu0
  %v109 = vmax.f32 %v106, 0.0
  %v110 = vld [vmem:[%s3] sm:$0xff]
  %v111 = vld [vmem:[%s3 + $0x8] sm:$0xff]
  %v112 = vld [vmem:[%s3 + $0x10] sm:$0xff]
  %v113 = vld [vmem:[%s3 + $0x18] sm:$0xff]
  %v114 = vld [vmem:[%s3 + $0x20] sm:$0xff]
  %v115 = vld [vmem:[%s3 + $0x28] sm:$0xff]
  %v116 = vld [vmem:[%s3 + $0x30] sm:$0xff]
  %v117 = vld [vmem:[%s3 + $0x38] sm:$0xff]
  %v118 = vld [vmem:[%s4] sm:$0x3]
  %v120 = vlaneseq
  %v121 = vshrl.u32 %v120, 7
  %v122 = vsub.s32 0, %v121
  %v123 = vrot.slane %v118, %v122
  %v124 = vlaneseq
  %v125 = vshrl.u32 %v124, 7
  %v126 = vsub.s32 1, %v125
  %v127 = vrot.slane %v118, %v126
  %vm130 = vcmask 261120
  %v132 = vsel %vm130, %v109, 0
  %134 = vmatprep.subr.mxu0 %v111
  %135 = vmatpush1.msra.mxu0 %v110
  %136 = vmatprep.subr.mxu0 %v113
  %137 = vmatpush1.msra.mxu0 %v112
  %138 = vmatprep.subr.mxu0 %v115
  %139 = vmatpush1.msra.mxu0 %v114
  %140 = vmatprep.subr.mxu0 %v117
  %141 = vmatpush1.msra.mxu0 %v116
  %142 = vmatprep.subr.mxu0 0.0
  %143 = vmatpush1.msra.mxu0 0.0
  %144 = vmatprep.subr.mxu0 0.0
  %145 = vmatpush1.msra.mxu0 0.0
  %146 = vmatprep.subr.mxu0 0.0
  %147 = vmatpush1.msra.mxu0 0.0
  %148 = vmatprep.subr.mxu0 0.0
  %149 = vmatpush1.msra.mxu0 0.0
  %150 = vmatprep.subr.mxu0 0.0
  %151 = vmatpush1.msra.mxu0 0.0
  %152 = vmatprep.subr.mxu0 0.0
  %153 = vmatpush1.msra.mxu0 0.0
  %154 = vmatprep.subr.mxu0 0.0
  %155 = vmatpush1.msra.mxu0 0.0
  %156 = vmatprep.subr.mxu0 0.0
  %157 = vmatpush1.msra.mxu0 0.0
  %158 = vmatprep.subr.mxu0 0.0
  %159 = vmatpush1.msra.mxu0 0.0
  %160 = vmatprep.subr.mxu0 0.0
  %161 = vmatpush1.msra.mxu0 0.0
  %162 = vmatprep.subr.mxu0 0.0
  %163 = vmatpush1.msra.mxu0 0.0
  %164 = vmatprep.subr.mxu0 0.0
  %165 = vmatpush1.msra.mxu0 0.0
  %166 = vmatprep.subr.mxu0 0.0
  %167 = vmatpush1.msra.mxu0 0.0
  %168 = vmatprep.subr.mxu0 0.0
  %169 = vmatpush1.msra.mxu0 0.0
  %170 = vmatprep.subr.mxu0 0.0
  %171 = vmatpush1.msra.mxu0 0.0
  %172 = vmatprep.subr.mxu0 0.0
  %173 = vmatpush1.msra.mxu0 0.0
  %174 = vmatprep.subr.mxu0 0.0
  %175 = vmatpush1.msra.mxu0 0.0
  %176 = vmatprep.subr.mxu0 0.0
  %177 = vmatpush1.msra.mxu0 0.0
  %178 = vmatprep.subr.mxu0 0.0
  %179 = vmatpush1.msra.mxu0 0.0
  %180 = vmatprep.subr.mxu0 0.0
  %181 = vmatpush1.msra.mxu0 0.0
  %182 = vmatprep.subr.mxu0 0.0
  %183 = vmatpush1.msra.mxu0 0.0
  %184 = vmatprep.subr.mxu0 0.0
  %185 = vmatpush1.msra.mxu0 0.0
  %186 = vmatprep.subr.mxu0 0.0
  %187 = vmatpush1.msra.mxu0 0.0
  %188 = vmatprep.subr.mxu0 0.0
  %189 = vmatpush1.msra.mxu0 0.0
  %190 = vmatprep.subr.mxu0 0.0
  %191 = vmatpush1.msra.mxu0 0.0
  %192 = vmatprep.subr.mxu0 0.0
  %193 = vmatpush1.msra.mxu0 0.0
  %194 = vmatprep.subr.mxu0 0.0
  %195 = vmatpush1.msra.mxu0 0.0
  %196 = vmatprep.subr.mxu0 0.0
  %197 = vmatpush1.msra.mxu0 0.0
  %198 = vmatprep.mubr.f32.mxu0 0.0
  %199 = vmatmul.mubr.f32.gmra.mrb[0].mxu0 %v132
  %v200 = vpop.f32.mrb[0].mxu0
  %v201 = vadd.f32 %v123, %v200
  %v202 = vpop.f32.mrb[0].mxu0
  %v203 = vadd.f32 %v127, %v202
  %204 = vdwg.mxu0
  %v205 = vmax.f32 %v201, 0.0
  %v206 = vmax.f32 %v203, 0.0
  %v207 = vld [vmem:[%s5] sm:$0xff]
  %v208 = vld [vmem:[%s5 + $0x8] sm:$0xff]
  %v209 = vld [vmem:[%s5 + $0x10] sm:$0xff]
  %v210 = vld [vmem:[%s5 + $0x18] sm:$0xff]
  %v211 = vld [vmem:[%s5 + $0x20] sm:$0xff]
  %v212 = vld [vmem:[%s5 + $0x28] sm:$0xff]
  %v213 = vld [vmem:[%s5 + $0x30] sm:$0xff]
  %v214 = vld [vmem:[%s5 + $0x38] sm:$0xff]
  %v215 = vld [vmem:[%s5 + $0x40] sm:$0xff]
  %v216 = vld [vmem:[%s5 + $0x48] sm:$0xff]
  %v217 = vld [vmem:[%s5 + $0x50] sm:$0xff]
  %v218 = vld [vmem:[%s5 + $0x58] sm:$0xff]
  %v219 = vld [vmem:[%s5 + $0x60] sm:$0xff]
  %v220 = vld [vmem:[%s5 + $0x68] sm:$0xff]
  %v221 = vld [vmem:[%s5 + $0x70] sm:$0xff]
  %v222 = vld [vmem:[%s5 + $0x78] sm:$0xff]
  %v223 = vld [vmem:[%s5 + $0x80] sm:$0xff]
  %v224 = vld [vmem:[%s5 + $0x88] sm:$0xff]
  %v225 = vld [vmem:[%s5 + $0x90] sm:$0xff]
  %v226 = vld [vmem:[%s5 + $0x98] sm:$0xff]
  %v227 = vld [vmem:[%s5 + $0xa0] sm:$0xff]
  %v228 = vld [vmem:[%s5 + $0xa8] sm:$0xff]
  %v229 = vld [vmem:[%s5 + $0xb0] sm:$0xff]
  %v230 = vld [vmem:[%s5 + $0xb8] sm:$0xff]
  %v231 = vld [vmem:[%s5 + $0xc0] sm:$0xff]
  %v232 = vld [vmem:[%s5 + $0xc8] sm:$0xff]
  %v233 = vld [vmem:[%s5 + $0xd0] sm:$0xff]
  %v234 = vld [vmem:[%s5 + $0xd8] sm:$0xff]
  %v235 = vld [vmem:[%s5 + $0xe0] sm:$0xff]
  %v236 = vld [vmem:[%s5 + $0xe8] sm:$0xff]
  %v237 = vld [vmem:[%s5 + $0xf0] sm:$0xff]
  %v238 = vld [vmem:[%s5 + $0xf8] sm:$0xff]
  %v239 = vld [vmem:[%s5 + $0x100] sm:$0xff]
  %v240 = vld [vmem:[%s5 + $0x108] sm:$0xff]
  %v241 = vld [vmem:[%s5 + $0x110] sm:$0xff]
  %v242 = vld [vmem:[%s5 + $0x118] sm:$0xff]
  %v243 = vld [vmem:[%s5 + $0x120] sm:$0xff]
  %v244 = vld [vmem:[%s5 + $0x128] sm:$0xff]
  %v245 = vld [vmem:[%s5 + $0x130] sm:$0xff]
  %v246 = vld [vmem:[%s5 + $0x138] sm:$0xff]
  %v247 = vld [vmem:[%s5 + $0x140] sm:$0xff]
  %v248 = vld [vmem:[%s5 + $0x148] sm:$0xff]
  %v249 = vld [vmem:[%s5 + $0x150] sm:$0xff]
  %v250 = vld [vmem:[%s5 + $0x158] sm:$0xff]
  %v251 = vld [vmem:[%s5 + $0x160] sm:$0xff]
  %v252 = vld [vmem:[%s5 + $0x168] sm:$0xff]
  %v253 = vld [vmem:[%s5 + $0x170] sm:$0xff]
  %v254 = vld [vmem:[%s5 + $0x178] sm:$0xff]
  %v255 = vld [vmem:[%s5 + $0x180] sm:$0xff]
  %v256 = vld [vmem:[%s5 + $0x188] sm:$0xff]
  %v257 = vld [vmem:[%s5 + $0x190] sm:$0xff]
  %v258 = vld [vmem:[%s5 + $0x198] sm:$0xff]
  %v259 = vld [vmem:[%s5 + $0x1a0] sm:$0xff]
  %v260 = vld [vmem:[%s5 + $0x1a8] sm:$0xff]
  %v261 = vld [vmem:[%s5 + $0x1b0] sm:$0xff]
  %v262 = vld [vmem:[%s5 + $0x1b8] sm:$0xff]
  %v263 = vld [vmem:[%s5 + $0x1c0] sm:$0xff]
  %v264 = vld [vmem:[%s5 + $0x1c8] sm:$0xff]
  %v265 = vld [vmem:[%s5 + $0x1d0] sm:$0xff]
  %v266 = vld [vmem:[%s5 + $0x1d8] sm:$0xff]
  %v267 = vld [vmem:[%s5 + $0x1e0] sm:$0xff]
  %v268 = vld [vmem:[%s5 + $0x1e8] sm:$0xff]
  %v269 = vld [vmem:[%s5 + $0x1f0] sm:$0xff]
  %v270 = vld [vmem:[%s5 + $0x1f8] sm:$0xff]
  %v271 = vld [vmem:[%s5 + $0x200] sm:$0xff]
  %v272 = vld [vmem:[%s5 + $0x208] sm:$0xff]
  %v273 = vld [vmem:[%s5 + $0x210] sm:$0xff]
  %v274 = vld [vmem:[%s5 + $0x218] sm:$0xff]
  %v275 = vld [vmem:[%s5 + $0x220] sm:$0xff]
  %v276 = vld [vmem:[%s5 + $0x228] sm:$0xff]
  %v277 = vld [vmem:[%s5 + $0x230] sm:$0xff]
  %v278 = vld [vmem:[%s5 + $0x238] sm:$0xff]
  %v279 = vld [vmem:[%s5 + $0x240] sm:$0xff]
  %v280 = vld [vmem:[%s5 + $0x248] sm:$0xff]
  %v281 = vld [vmem:[%s5 + $0x250] sm:$0xff]
  %v282 = vld [vmem:[%s5 + $0x258] sm:$0xff]
  %v283 = vld [vmem:[%s5 + $0x260] sm:$0xff]
  %v284 = vld [vmem:[%s5 + $0x268] sm:$0xff]
  %v285 = vld [vmem:[%s5 + $0x270] sm:$0xff]
  %v286 = vld [vmem:[%s5 + $0x278] sm:$0xff]
  %v287 = vld [vmem:[%s5 + $0x280] sm:$0xff]
  %v288 = vld [vmem:[%s5 + $0x288] sm:$0xff]
  %v289 = vld [vmem:[%s5 + $0x290] sm:$0xff]
  %v290 = vld [vmem:[%s5 + $0x298] sm:$0xff]
  %v291 = vld [vmem:[%s5 + $0x2a0] sm:$0xff]
  %v292 = vld [vmem:[%s5 + $0x2a8] sm:$0xff]
  %v293 = vld [vmem:[%s5 + $0x2b0] sm:$0xff]
  %v294 = vld [vmem:[%s5 + $0x2b8] sm:$0xff]
  %v295 = vld [vmem:[%s5 + $0x2c0] sm:$0xff]
  %v296 = vld [vmem:[%s5 + $0x2c8] sm:$0xff]
  %v297 = vld [vmem:[%s5 + $0x2d0] sm:$0xff]
  %v298 = vld [vmem:[%s5 + $0x2d8] sm:$0xff]
  %v299 = vld [vmem:[%s5 + $0x2e0] sm:$0xff]
  %v300 = vld [vmem:[%s5 + $0x2e8] sm:$0xff]
  %v301 = vld [vmem:[%s5 + $0x2f0] sm:$0xff]
  %v302 = vld [vmem:[%s5 + $0x2f8] sm:$0xff]
  %v303 = vld [vmem:[%s5 + $0x300] sm:$0xff]
  %v304 = vld [vmem:[%s5 + $0x308] sm:$0xff]
  %v305 = vld [vmem:[%s5 + $0x310] sm:$0xff]
  %v306 = vld [vmem:[%s5 + $0x318] sm:$0xff]
  %v307 = vld [vmem:[%s5 + $0x320] sm:$0xff]
  %v308 = vld [vmem:[%s5 + $0x328] sm:$0xff]
  %v309 = vld [vmem:[%s5 + $0x330] sm:$0xff]
  %v310 = vld [vmem:[%s5 + $0x338] sm:$0xff]
  %v311 = vld [vmem:[%s5 + $0x340] sm:$0xff]
  %v312 = vld [vmem:[%s5 + $0x348] sm:$0xff]
  %v313 = vld [vmem:[%s5 + $0x350] sm:$0xff]
  %v314 = vld [vmem:[%s5 + $0x358] sm:$0xff]
  %v315 = vld [vmem:[%s5 + $0x360] sm:$0xff]
  %v316 = vld [vmem:[%s5 + $0x368] sm:$0xff]
  %v317 = vld [vmem:[%s5 + $0x370] sm:$0xff]
  %v318 = vld [vmem:[%s5 + $0x378] sm:$0xff]
  %v319 = vld [vmem:[%s5 + $0x380] sm:$0xff]
  %v320 = vld [vmem:[%s5 + $0x388] sm:$0xff]
  %v321 = vld [vmem:[%s5 + $0x390] sm:$0xff]
  %v322 = vld [vmem:[%s5 + $0x398] sm:$0xff]
  %v323 = vld [vmem:[%s5 + $0x3a0] sm:$0xff]
  %v324 = vld [vmem:[%s5 + $0x3a8] sm:$0xff]
  %v325 = vld [vmem:[%s5 + $0x3b0] sm:$0xff]
  %v326 = vld [vmem:[%s5 + $0x3b8] sm:$0xff]
  %v327 = vld [vmem:[%s5 + $0x3c0] sm:$0xff]
  %v328 = vld [vmem:[%s5 + $0x3c8] sm:$0xff]
  %v329 = vld [vmem:[%s5 + $0x3d0] sm:$0xff]
  %v330 = vld [vmem:[%s5 + $0x3d8] sm:$0xff]
  %v331 = vld [vmem:[%s5 + $0x3e0] sm:$0xff]
  %v332 = vld [vmem:[%s5 + $0x3e8] sm:$0xff]
  %v333 = vld [vmem:[%s5 + $0x3f0] sm:$0xff]
  %v334 = vld [vmem:[%s5 + $0x3f8] sm:$0xff]
  %v335 = vld [vmem:[%s5 + $0x400] sm:$0xff]
  %v336 = vld [vmem:[%s5 + $0x408] sm:$0xff]
  %v337 = vld [vmem:[%s5 + $0x410] sm:$0xff]
  %v338 = vld [vmem:[%s5 + $0x418] sm:$0xff]
  %v339 = vld [vmem:[%s5 + $0x420] sm:$0xff]
  %v340 = vld [vmem:[%s5 + $0x428] sm:$0xff]
  %v341 = vld [vmem:[%s5 + $0x430] sm:$0xff]
  %v342 = vld [vmem:[%s5 + $0x438] sm:$0xff]
  %v343 = vld [vmem:[%s5 + $0x440] sm:$0xff]
  %v344 = vld [vmem:[%s5 + $0x448] sm:$0xff]
  %v345 = vld [vmem:[%s5 + $0x450] sm:$0xff]
  %v346 = vld [vmem:[%s5 + $0x458] sm:$0xff]
  %v347 = vld [vmem:[%s5 + $0x460] sm:$0xff]
  %v348 = vld [vmem:[%s5 + $0x468] sm:$0xff]
  %v349 = vld [vmem:[%s5 + $0x470] sm:$0xff]
  %v350 = vld [vmem:[%s5 + $0x478] sm:$0xff]
  %v351 = vld [vmem:[%s5 + $0x480] sm:$0xff]
  %v352 = vld [vmem:[%s5 + $0x488] sm:$0xff]
  %v353 = vld [vmem:[%s5 + $0x490] sm:$0xff]
  %v354 = vld [vmem:[%s5 + $0x498] sm:$0xff]
  %v355 = vld [vmem:[%s5 + $0x4a0] sm:$0xff]
  %v356 = vld [vmem:[%s5 + $0x4a8] sm:$0xff]
  %v357 = vld [vmem:[%s5 + $0x4b0] sm:$0xff]
  %v358 = vld [vmem:[%s5 + $0x4b8] sm:$0xff]
  %v359 = vld [vmem:[%s5 + $0x4c0] sm:$0xff]
  %v360 = vld [vmem:[%s5 + $0x4c8] sm:$0xff]
  %v361 = vld [vmem:[%s5 + $0x4d0] sm:$0xff]
  %v362 = vld [vmem:[%s5 + $0x4d8] sm:$0xff]
  %v363 = vld [vmem:[%s5 + $0x4e0] sm:$0xff]
  %v364 = vld [vmem:[%s5 + $0x4e8] sm:$0xff]
  %v365 = vld [vmem:[%s5 + $0x4f0] sm:$0xff]
  %v366 = vld [vmem:[%s5 + $0x4f8] sm:$0xff]
  %v367 = vld [vmem:[%s5 + $0x500] sm:$0xff]
  %v368 = vld [vmem:[%s5 + $0x508] sm:$0xff]
  %v369 = vld [vmem:[%s5 + $0x510] sm:$0xff]
  %v370 = vld [vmem:[%s5 + $0x518] sm:$0xff]
  %v371 = vld [vmem:[%s5 + $0x520] sm:$0xff]
  %v372 = vld [vmem:[%s5 + $0x528] sm:$0xff]
  %v373 = vld [vmem:[%s5 + $0x530] sm:$0xff]
  %v374 = vld [vmem:[%s5 + $0x538] sm:$0xff]
  %v375 = vld [vmem:[%s5 + $0x540] sm:$0xff]
  %v376 = vld [vmem:[%s5 + $0x548] sm:$0xff]
  %v377 = vld [vmem:[%s5 + $0x550] sm:$0xff]
  %v378 = vld [vmem:[%s5 + $0x558] sm:$0xff]
  %v379 = vld [vmem:[%s5 + $0x560] sm:$0xff]
  %v380 = vld [vmem:[%s5 + $0x568] sm:$0xff]
  %v381 = vld [vmem:[%s5 + $0x570] sm:$0xff]
  %v382 = vld [vmem:[%s5 + $0x578] sm:$0xff]
  %v383 = vld [vmem:[%s5 + $0x580] sm:$0xff]
  %v384 = vld [vmem:[%s5 + $0x588] sm:$0xff]
  %v385 = vld [vmem:[%s5 + $0x590] sm:$0xff]
  %v386 = vld [vmem:[%s5 + $0x598] sm:$0xff]
  %v387 = vld [vmem:[%s5 + $0x5a0] sm:$0xff]
  %v388 = vld [vmem:[%s5 + $0x5a8] sm:$0xff]
  %v389 = vld [vmem:[%s5 + $0x5b0] sm:$0xff]
  %v390 = vld [vmem:[%s5 + $0x5b8] sm:$0xff]
  %v391 = vld [vmem:[%s5 + $0x5c0] sm:$0xff]
  %v392 = vld [vmem:[%s5 + $0x5c8] sm:$0xff]
  %v393 = vld [vmem:[%s5 + $0x5d0] sm:$0xff]
  %v394 = vld [vmem:[%s5 + $0x5d8] sm:$0xff]
  %v395 = vld [vmem:[%s5 + $0x5e0] sm:$0xff]
  %v396 = vld [vmem:[%s5 + $0x5e8] sm:$0xff]
  %v397 = vld [vmem:[%s5 + $0x5f0] sm:$0xff]
  %v398 = vld [vmem:[%s5 + $0x5f8] sm:$0xff]
  %v399 = vld [vmem:[%s5 + $0x600] sm:$0xff]
  %v400 = vld [vmem:[%s5 + $0x608] sm:$0xff]
  %v401 = vld [vmem:[%s5 + $0x610] sm:$0xff]
  %v402 = vld [vmem:[%s5 + $0x618] sm:$0xff]
  %v403 = vld [vmem:[%s5 + $0x620] sm:$0xff]
  %v404 = vld [vmem:[%s5 + $0x628] sm:$0xff]
  %v405 = vld [vmem:[%s5 + $0x630] sm:$0xff]
  %v406 = vld [vmem:[%s5 + $0x638] sm:$0xff]
  %v407 = vld [vmem:[%s5 + $0x640] sm:$0xff]
  %v408 = vld [vmem:[%s5 + $0x648] sm:$0xff]
  %v409 = vld [vmem:[%s5 + $0x650] sm:$0xff]
  %v410 = vld [vmem:[%s5 + $0x658] sm:$0xff]
  %v411 = vld [vmem:[%s5 + $0x660] sm:$0xff]
  %v412 = vld [vmem:[%s5 + $0x668] sm:$0xff]
  %v413 = vld [vmem:[%s5 + $0x670] sm:$0xff]
  %v414 = vld [vmem:[%s5 + $0x678] sm:$0xff]
  %v415 = vld [vmem:[%s5 + $0x680] sm:$0xff]
  %v416 = vld [vmem:[%s5 + $0x688] sm:$0xff]
  %v417 = vld [vmem:[%s5 + $0x690] sm:$0xff]
  %v418 = vld [vmem:[%s5 + $0x698] sm:$0xff]
  %v419 = vld [vmem:[%s5 + $0x6a0] sm:$0xff]
  %v420 = vld [vmem:[%s5 + $0x6a8] sm:$0xff]
  %v421 = vld [vmem:[%s5 + $0x6b0] sm:$0xff]
  %v422 = vld [vmem:[%s5 + $0x6b8] sm:$0xff]
  %v423 = vld [vmem:[%s5 + $0x6c0] sm:$0xff]
  %v424 = vld [vmem:[%s5 + $0x6c8] sm:$0xff]
  %v425 = vld [vmem:[%s5 + $0x6d0] sm:$0xff]
  %v426 = vld [vmem:[%s5 + $0x6d8] sm:$0xff]
  %v427 = vld [vmem:[%s5 + $0x6e0] sm:$0xff]
  %v428 = vld [vmem:[%s5 + $0x6e8] sm:$0xff]
  %v429 = vld [vmem:[%s5 + $0x6f0] sm:$0xff]
  %v430 = vld [vmem:[%s5 + $0x6f8] sm:$0xff]
  %v431 = vld [vmem:[%s5 + $0x700] sm:$0xff]
  %v432 = vld [vmem:[%s5 + $0x708] sm:$0xff]
  %v433 = vld [vmem:[%s5 + $0x710] sm:$0xff]
  %v434 = vld [vmem:[%s5 + $0x718] sm:$0xff]
  %v435 = vld [vmem:[%s5 + $0x720] sm:$0xff]
  %v436 = vld [vmem:[%s5 + $0x728] sm:$0xff]
  %v437 = vld [vmem:[%s5 + $0x730] sm:$0xff]
  %v438 = vld [vmem:[%s5 + $0x738] sm:$0xff]
  %v439 = vld [vmem:[%s5 + $0x740] sm:$0xff]
  %v440 = vld [vmem:[%s5 + $0x748] sm:$0xff]
  %v441 = vld [vmem:[%s5 + $0x750] sm:$0xff]
  %v442 = vld [vmem:[%s5 + $0x758] sm:$0xff]
  %v443 = vld [vmem:[%s5 + $0x760] sm:$0xff]
  %v444 = vld [vmem:[%s5 + $0x768] sm:$0xff]
  %v445 = vld [vmem:[%s5 + $0x770] sm:$0xff]
  %v446 = vld [vmem:[%s5 + $0x778] sm:$0xff]
  %v447 = vld [vmem:[%s5 + $0x780] sm:$0xff]
  %v448 = vld [vmem:[%s5 + $0x788] sm:$0xff]
  %v449 = vld [vmem:[%s5 + $0x790] sm:$0xff]
  %v450 = vld [vmem:[%s5 + $0x798] sm:$0xff]
  %v451 = vld [vmem:[%s5 + $0x7a0] sm:$0xff]
  %v452 = vld [vmem:[%s5 + $0x7a8] sm:$0xff]
  %v453 = vld [vmem:[%s5 + $0x7b0] sm:$0xff]
  %v454 = vld [vmem:[%s5 + $0x7b8] sm:$0xff]
  %v455 = vld [vmem:[%s5 + $0x7c0] sm:$0xff]
  %v456 = vld [vmem:[%s5 + $0x7c8] sm:$0xff]
  %v457 = vld [vmem:[%s5 + $0x7d0] sm:$0xff]
  %v458 = vld [vmem:[%s5 + $0x7d8] sm:$0xff]
  %v459 = vld [vmem:[%s5 + $0x7e0] sm:$0xff]
  %v460 = vld [vmem:[%s5 + $0x7e8] sm:$0xff]
  %v461 = vld [vmem:[%s5 + $0x7f0] sm:$0xff]
  %v462 = vld [vmem:[%s5 + $0x7f8] sm:$0xff]
  %v463 = vld [vmem:[%s6] sm:$0xff]
  %v465 = vlaneseq
  %v466 = vshrl.u32 %v465, 7
  %v467 = vsub.s32 0, %v466
  %v468 = vrot.slane %v463, %v467
  %v469 = vlaneseq
  %v470 = vshrl.u32 %v469, 7
  %v471 = vsub.s32 1, %v470
  %v472 = vrot.slane %v463, %v471
  %v473 = vlaneseq
  %v474 = vshrl.u32 %v473, 7
  %v475 = vsub.s32 2, %v474
  %v476 = vrot.slane %v463, %v475
  %v477 = vlaneseq
  %v478 = vshrl.u32 %v477, 7
  %v479 = vsub.s32 3, %v478
  %v480 = vrot.slane %v463, %v479
  %v481 = vlaneseq
  %v482 = vshrl.u32 %v481, 7
  %v483 = vsub.s32 4, %v482
  %v484 = vrot.slane %v463, %v483
  %v485 = vlaneseq
  %v486 = vshrl.u32 %v485, 7
  %v487 = vsub.s32 5, %v486
  %v488 = vrot.slane %v463, %v487
  %v489 = vlaneseq
  %v490 = vshrl.u32 %v489, 7
  %v491 = vsub.s32 6, %v490
  %v492 = vrot.slane %v463, %v491
  %v493 = vlaneseq
  %v494 = vshrl.u32 %v493, 7
  %v495 = vsub.s32 7, %v494
  %v496 = vrot.slane %v463, %v495
  %505 = vmatprep.subr.mxu0 %v208
  %506 = vmatpush1.msra.mxu0 %v207
  %507 = vmatprep.subr.mxu0 %v216
  %508 = vmatpush1.msra.mxu0 %v215
  %509 = vmatprep.subr.mxu0 %v224
  %510 = vmatpush1.msra.mxu0 %v223
  %511 = vmatprep.subr.mxu0 %v232
  %512 = vmatpush1.msra.mxu0 %v231
  %513 = vmatprep.subr.mxu0 %v240
  %514 = vmatpush1.msra.mxu0 %v239
  %515 = vmatprep.subr.mxu0 %v248
  %516 = vmatpush1.msra.mxu0 %v247
  %517 = vmatprep.subr.mxu0 %v256
  %518 = vmatpush1.msra.mxu0 %v255
  %519 = vmatprep.subr.mxu0 %v264
  %520 = vmatpush1.msra.mxu0 %v263
  %521 = vmatprep.subr.mxu0 %v272
  %522 = vmatpush1.msra.mxu0 %v271
  %523 = vmatprep.subr.mxu0 %v280
  %524 = vmatpush1.msra.mxu0 %v279
  %525 = vmatprep.subr.mxu0 %v288
  %526 = vmatpush1.msra.mxu0 %v287
  %527 = vmatprep.subr.mxu0 %v296
  %528 = vmatpush1.msra.mxu0 %v295
  %529 = vmatprep.subr.mxu0 %v304
  %530 = vmatpush1.msra.mxu0 %v303
  %531 = vmatprep.subr.mxu0 %v312
  %532 = vmatpush1.msra.mxu0 %v311
  %533 = vmatprep.subr.mxu0 %v320
  %534 = vmatpush1.msra.mxu0 %v319
  %535 = vmatprep.subr.mxu0 %v328
  %536 = vmatpush1.msra.mxu0 %v327
  %537 = vmatprep.subr.mxu0 %v336
  %538 = vmatpush1.msra.mxu0 %v335
  %539 = vmatprep.subr.mxu0 %v344
  %540 = vmatpush1.msra.mxu0 %v343
  %541 = vmatprep.subr.mxu0 %v352
  %542 = vmatpush1.msra.mxu0 %v351
  %543 = vmatprep.subr.mxu0 %v360
  %544 = vmatpush1.msra.mxu0 %v359
  %545 = vmatprep.subr.mxu0 %v368
  %546 = vmatpush1.msra.mxu0 %v367
  %547 = vmatprep.subr.mxu0 %v376
  %548 = vmatpush1.msra.mxu0 %v375
  %549 = vmatprep.subr.mxu0 %v384
  %550 = vmatpush1.msra.mxu0 %v383
  %551 = vmatprep.subr.mxu0 %v392
  %552 = vmatpush1.msra.mxu0 %v391
  %553 = vmatprep.subr.mxu0 %v400
  %554 = vmatpush1.msra.mxu0 %v399
  %555 = vmatprep.subr.mxu0 %v408
  %556 = vmatpush1.msra.mxu0 %v407
  %557 = vmatprep.subr.mxu0 %v416
  %558 = vmatpush1.msra.mxu0 %v415
  %559 = vmatprep.subr.mxu0 %v424
  %560 = vmatpush1.msra.mxu0 %v423
  %561 = vmatprep.subr.mxu0 %v432
  %562 = vmatpush1.msra.mxu0 %v431
  %563 = vmatprep.subr.mxu0 %v440
  %564 = vmatpush1.msra.mxu0 %v439
  %565 = vmatprep.subr.mxu0 %v448
  %566 = vmatpush1.msra.mxu0 %v447
  %567 = vmatprep.subr.mxu0 %v456
  %568 = vmatpush1.msra.mxu0 %v455
  %569 = vmatprep.mubr.f32.mxu0 %v206
  %570 = vmatmul.mubr.f32.gmra.mrb[0].mxu0 %v205
  %v571 = vpop.f32.mrb[0].mxu0
  %v572 = vadd.f32 %v468, %v571
  %v573 = vpop.f32.mrb[0].mxu0
  %v574 = vadd.f32 %v472, %v573
  %575 = vdwg.mxu0
  %576 = vmatprep.subr.mxu0 %v210
  %577 = vmatpush1.msra.mxu0 %v209
  %578 = vmatprep.subr.mxu0 %v218
  %579 = vmatpush1.msra.mxu0 %v217
  %580 = vmatprep.subr.mxu0 %v226
  %581 = vmatpush1.msra.mxu0 %v225
  %582 = vmatprep.subr.mxu0 %v234
  %583 = vmatpush1.msra.mxu0 %v233
  %584 = vmatprep.subr.mxu0 %v242
  %585 = vmatpush1.msra.mxu0 %v241
  %586 = vmatprep.subr.mxu0 %v250
  %587 = vmatpush1.msra.mxu0 %v249
  %588 = vmatprep.subr.mxu0 %v258
  %589 = vmatpush1.msra.mxu0 %v257
  %590 = vmatprep.subr.mxu0 %v266
  %591 = vmatpush1.msra.mxu0 %v265
  %592 = vmatprep.subr.mxu0 %v274
  %593 = vmatpush1.msra.mxu0 %v273
  %594 = vmatprep.subr.mxu0 %v282
  %595 = vmatpush1.msra.mxu0 %v281
  %596 = vmatprep.subr.mxu0 %v290
  %597 = vmatpush1.msra.mxu0 %v289
  %598 = vmatprep.subr.mxu0 %v298
  %599 = vmatpush1.msra.mxu0 %v297
  %600 = vmatprep.subr.mxu0 %v306
  %601 = vmatpush1.msra.mxu0 %v305
  %602 = vmatprep.subr.mxu0 %v314
  %603 = vmatpush1.msra.mxu0 %v313
  %604 = vmatprep.subr.mxu0 %v322
  %605 = vmatpush1.msra.mxu0 %v321
  %606 = vmatprep.subr.mxu0 %v330
  %607 = vmatpush1.msra.mxu0 %v329
  %608 = vmatprep.subr.mxu0 %v338
  %609 = vmatpush1.msra.mxu0 %v337
  %610 = vmatprep.subr.mxu0 %v346
  %611 = vmatpush1.msra.mxu0 %v345
  %612 = vmatprep.subr.mxu0 %v354
  %613 = vmatpush1.msra.mxu0 %v353
  %614 = vmatprep.subr.mxu0 %v362
  %615 = vmatpush1.msra.mxu0 %v361
  %616 = vmatprep.subr.mxu0 %v370
  %617 = vmatpush1.msra.mxu0 %v369
  %618 = vmatprep.subr.mxu0 %v378
  %619 = vmatpush1.msra.mxu0 %v377
  %620 = vmatprep.subr.mxu0 %v386
  %621 = vmatpush1.msra.mxu0 %v385
  %622 = vmatprep.subr.mxu0 %v394
  %623 = vmatpush1.msra.mxu0 %v393
  %624 = vmatprep.subr.mxu0 %v402
  %625 = vmatpush1.msra.mxu0 %v401
  %626 = vmatprep.subr.mxu0 %v410
  %627 = vmatpush1.msra.mxu0 %v409
  %628 = vmatprep.subr.mxu0 %v418
  %629 = vmatpush1.msra.mxu0 %v417
  %630 = vmatprep.subr.mxu0 %v426
  %631 = vmatpush1.msra.mxu0 %v425
  %632 = vmatprep.subr.mxu0 %v434
  %633 = vmatpush1.msra.mxu0 %v433
  %634 = vmatprep.subr.mxu0 %v442
  %635 = vmatpush1.msra.mxu0 %v441
  %636 = vmatprep.subr.mxu0 %v450
  %637 = vmatpush1.msra.mxu0 %v449
  %638 = vmatprep.subr.mxu0 %v458
  %639 = vmatpush1.msra.mxu0 %v457
  %640 = vmatprep.mubr.f32.mxu0 %v206
  %641 = vmatmul.mubr.f32.gmra.mrb[0].mxu0 %v205
  %v642 = vpop.f32.mrb[0].mxu0
  %v643 = vadd.f32 %v476, %v642
  %v644 = vpop.f32.mrb[0].mxu0
  %v645 = vadd.f32 %v480, %v644
  %646 = vdwg.mxu0
  %647 = vmatprep.subr.mxu0 %v212
  %648 = vmatpush1.msra.mxu0 %v211
  %649 = vmatprep.subr.mxu0 %v220
  %650 = vmatpush1.msra.mxu0 %v219
  %651 = vmatprep.subr.mxu0 %v228
  %652 = vmatpush1.msra.mxu0 %v227
  %653 = vmatprep.subr.mxu0 %v236
  %654 = vmatpush1.msra.mxu0 %v235
  %655 = vmatprep.subr.mxu0 %v244
  %656 = vmatpush1.msra.mxu0 %v243
  %657 = vmatprep.subr.mxu0 %v252
  %658 = vmatpush1.msra.mxu0 %v251
  %659 = vmatprep.subr.mxu0 %v260
  %660 = vmatpush1.msra.mxu0 %v259
  %661 = vmatprep.subr.mxu0 %v268
  %662 = vmatpush1.msra.mxu0 %v267
  %663 = vmatprep.subr.mxu0 %v276
  %664 = vmatpush1.msra.mxu0 %v275
  %665 = vmatprep.subr.mxu0 %v284
  %666 = vmatpush1.msra.mxu0 %v283
  %667 = vmatprep.subr.mxu0 %v292
  %668 = vmatpush1.msra.mxu0 %v291
  %669 = vmatprep.subr.mxu0 %v300
  %670 = vmatpush1.msra.mxu0 %v299
  %671 = vmatprep.subr.mxu0 %v308
  %672 = vmatpush1.msra.mxu0 %v307
  %673 = vmatprep.subr.mxu0 %v316
  %674 = vmatpush1.msra.mxu0 %v315
  %675 = vmatprep.subr.mxu0 %v324
  %676 = vmatpush1.msra.mxu0 %v323
  %677 = vmatprep.subr.mxu0 %v332
  %678 = vmatpush1.msra.mxu0 %v331
  %679 = vmatprep.subr.mxu0 %v340
  %680 = vmatpush1.msra.mxu0 %v339
  %681 = vmatprep.subr.mxu0 %v348
  %682 = vmatpush1.msra.mxu0 %v347
  %683 = vmatprep.subr.mxu0 %v356
  %684 = vmatpush1.msra.mxu0 %v355
  %685 = vmatprep.subr.mxu0 %v364
  %686 = vmatpush1.msra.mxu0 %v363
  %687 = vmatprep.subr.mxu0 %v372
  %688 = vmatpush1.msra.mxu0 %v371
  %689 = vmatprep.subr.mxu0 %v380
  %690 = vmatpush1.msra.mxu0 %v379
  %691 = vmatprep.subr.mxu0 %v388
  %692 = vmatpush1.msra.mxu0 %v387
  %693 = vmatprep.subr.mxu0 %v396
  %694 = vmatpush1.msra.mxu0 %v395
  %695 = vmatprep.subr.mxu0 %v404
  %696 = vmatpush1.msra.mxu0 %v403
  %697 = vmatprep.subr.mxu0 %v412
  %698 = vmatpush1.msra.mxu0 %v411
  %699 = vmatprep.subr.mxu0 %v420
  %700 = vmatpush1.msra.mxu0 %v419
  %701 = vmatprep.subr.mxu0 %v428
  %702 = vmatpush1.msra.mxu0 %v427
  %703 = vmatprep.subr.mxu0 %v436
  %704 = vmatpush1.msra.mxu0 %v435
  %705 = vmatprep.subr.mxu0 %v444
  %706 = vmatpush1.msra.mxu0 %v443
  %707 = vmatprep.subr.mxu0 %v452
  %708 = vmatpush1.msra.mxu0 %v451
  %709 = vmatprep.subr.mxu0 %v460
  %710 = vmatpush1.msra.mxu0 %v459
  %711 = vmatprep.mubr.f32.mxu0 %v206
  %712 = vmatmul.mubr.f32.gmra.mrb[0].mxu0 %v205
  %v713 = vpop.f32.mrb[0].mxu0
  %v714 = vadd.f32 %v484, %v713
  %v715 = vpop.f32.mrb[0].mxu0
  %v716 = vadd.f32 %v488, %v715
  %717 = vdwg.mxu0
  %718 = vmatprep.subr.mxu0 %v214
  %719 = vmatpush1.msra.mxu0 %v213
  %720 = vmatprep.subr.mxu0 %v222
  %721 = vmatpush1.msra.mxu0 %v221
  %722 = vmatprep.subr.mxu0 %v230
  %723 = vmatpush1.msra.mxu0 %v229
  %724 = vmatprep.subr.mxu0 %v238
  %725 = vmatpush1.msra.mxu0 %v237
  %726 = vmatprep.subr.mxu0 %v246
  %727 = vmatpush1.msra.mxu0 %v245
  %728 = vmatprep.subr.mxu0 %v254
  %729 = vmatpush1.msra.mxu0 %v253
  %730 = vmatprep.subr.mxu0 %v262
  %731 = vmatpush1.msra.mxu0 %v261
  %732 = vmatprep.subr.mxu0 %v270
  %733 = vmatpush1.msra.mxu0 %v269
  %734 = vmatprep.subr.mxu0 %v278
  %735 = vmatpush1.msra.mxu0 %v277
  %736 = vmatprep.subr.mxu0 %v286
  %737 = vmatpush1.msra.mxu0 %v285
  %738 = vmatprep.subr.mxu0 %v294
  %739 = vmatpush1.msra.mxu0 %v293
  %740 = vmatprep.subr.mxu0 %v302
  %741 = vmatpush1.msra.mxu0 %v301
  %742 = vmatprep.subr.mxu0 %v310
  %743 = vmatpush1.msra.mxu0 %v309
  %744 = vmatprep.subr.mxu0 %v318
  %745 = vmatpush1.msra.mxu0 %v317
  %746 = vmatprep.subr.mxu0 %v326
  %747 = vmatpush1.msra.mxu0 %v325
  %748 = vmatprep.subr.mxu0 %v334
  %749 = vmatpush1.msra.mxu0 %v333
  %750 = vmatprep.subr.mxu0 %v342
  %751 = vmatpush1.msra.mxu0 %v341
  %752 = vmatprep.subr.mxu0 %v350
  %753 = vmatpush1.msra.mxu0 %v349
  %754 = vmatprep.subr.mxu0 %v358
  %755 = vmatpush1.msra.mxu0 %v357
  %756 = vmatprep.subr.mxu0 %v366
  %757 = vmatpush1.msra.mxu0 %v365
  %758 = vmatprep.subr.mxu0 %v374
  %759 = vmatpush1.msra.mxu0 %v373
  %760 = vmatprep.subr.mxu0 %v382
  %761 = vmatpush1.msra.mxu0 %v381
  %762 = vmatprep.subr.mxu0 %v390
  %763 = vmatpush1.msra.mxu0 %v389
  %764 = vmatprep.subr.mxu0 %v398
  %765 = vmatpush1.msra.mxu0 %v397
  %766 = vmatprep.subr.mxu0 %v406
  %767 = vmatpush1.msra.mxu0 %v405
  %768 = vmatprep.subr.mxu0 %v414
  %769 = vmatpush1.msra.mxu0 %v413
  %770 = vmatprep.subr.mxu0 %v422
  %771 = vmatpush1.msra.mxu0 %v421
  %772 = vmatprep.subr.mxu0 %v430
  %773 = vmatpush1.msra.mxu0 %v429
  %774 = vmatprep.subr.mxu0 %v438
  %775 = vmatpush1.msra.mxu0 %v437
  %776 = vmatprep.subr.mxu0 %v446
  %777 = vmatpush1.msra.mxu0 %v445
  %778 = vmatprep.subr.mxu0 %v454
  %779 = vmatpush1.msra.mxu0 %v453
  %780 = vmatprep.subr.mxu0 %v462
  %781 = vmatpush1.msra.mxu0 %v461
  %782 = vmatprep.mubr.f32.mxu0 %v206
  %783 = vmatmul.mubr.f32.gmra.mrb[0].mxu0 %v205
  %v784 = vpop.f32.mrb[0].mxu0
  %v785 = vadd.f32 %v492, %v784
  %v786 = vpop.f32.mrb[0].mxu0
  %v787 = vadd.f32 %v496, %v786
  %788 = vdwg.mxu0
  %789 = vst [vmem:[%s7] sm:$0xff] %v572
  %790 = vst [vmem:[%s7 + $0x8] sm:$0xff] %v574
  %791 = vst [vmem:[%s7 + $0x10] sm:$0xff] %v643
  %792 = vst [vmem:[%s7 + $0x18] sm:$0xff] %v645
  %793 = vst [vmem:[%s7 + $0x20] sm:$0xff] %v714
  %794 = vst [vmem:[%s7 + $0x28] sm:$0xff] %v716
  %795 = vst [vmem:[%s7 + $0x30] sm:$0xff] %v785
  %796 = vst [vmem:[%s7 + $0x38] sm:$0xff] %v787
  // Predicated region
  $region30: #{quadruplet_forward.7} parent=0 // pred_check
    _
  $region31: #{quadruplet_forward.7} parent=0 // pred_check_branch
    %798 = sbr.rel (0) target = $region33
  $region32: #{quadruplet_forward.7} parent=0 // pred_region
    _
  $region33: #{quadruplet_forward.7} parent=0 // pred_fallthru
    _
  // Predicated region
  $region34: #{quadruplet_forward.7} parent=0 // pred_check
    _
  $region35: #{quadruplet_forward.7} parent=0 // pred_check_branch
    %800 = sbr.rel (0) target = $region37
  $region36: #{quadruplet_forward.7} parent=0 // pred_region
    _
  $region37: #{quadruplet_forward.7} parent=0 // pred_fallthru
    _

</llo_original>
